<compile_context>
chip_gen: v7x
topology: tpu7x:2x2x1
jax: 0.10.0
libtpu: 0.0.40
codegen_flags: <defaults>
</compile_context>

<pallas_src>
import functools

import jax
import jax.numpy as jnp
from jax.experimental import pallas as pl
from jax.experimental.pallas import tpu as pltpu

# Model / problem sizes (small, consistent with the module's forward)
BATCH = 2
B_PAD = 8           # batch padded to one sublane tile
SEQ = 8
D_IN = 187          # RNN input_size
D_PAD = 256         # padded input feature dim (zero-padded; extra W_ih cols are 0)
HIDDEN = 512        # RNN hidden_size
N_OUT = 5           # fc output features
N_OUT_PAD = 128     # lane-dense padded fc output width


def rnn_fc_kernel(x_ref, wih_ref, b_ref, whh_hbm, wfc_hbm, bfc_ref, o_ref,
                  whh_vmem, wfc_vmem, sem, *, seq_len, batch_pad):
    """x_ref:    (T*B_PAD, D_PAD) bf16, time-major rows (t major, b minor)
       wih_ref:  (D_PAD, H)       bf16  (VMEM, auto-DMA)
       b_ref:    (1, H)           f32   (= b_ih + b_hh)
       whh_hbm:  (H, H)           bf16  (HBM ref, manual DMA)
       wfc_hbm:  (H, N_OUT_PAD)   bf16  (HBM ref, manual DMA; cols >= N_OUT zero)
       bfc_ref:  (1, N_OUT_PAD)   f32   (entries >= N_OUT zero)
       o_ref:    (B_PAD, N_OUT_PAD) f32
       whh_vmem/wfc_vmem: VMEM scratch landing buffers; sem: DMA sems (2,)"""
    # --- kick off the recurrent / fc weight copies; overlap with projection ---
    whh_cp = pltpu.make_async_copy(whh_hbm, whh_vmem, sem.at[0])
    wfc_cp = pltpu.make_async_copy(wfc_hbm, wfc_vmem, sem.at[1])
    whh_cp.start()
    wfc_cp.start()

    # --- hoisted input projection + bias: one big matmul, off the serial path ---
    pre = (jnp.dot(x_ref[...], wih_ref[...], preferred_element_type=jnp.float32)
           + b_ref[...])                                    # (T*B_PAD, H) f32, 128 KiB

    # h_0 = 0  =>  h_1 = tanh(pre_0); skip the first W_hh matmul entirely.
    h = jnp.tanh(pre[0:batch_pad, :])                       # f32 activations

    # --- fully-unrolled serial recurrence (needs W_hh from here on) ---
    whh_cp.wait()
    for t in range(1, seq_len):                             # T is compile-time const
        hh = jnp.dot(h.astype(jnp.bfloat16), whh_vmem[...],
                     preferred_element_type=jnp.float32)    # bf16 MXU, f32 accum
        # (t*8, H) slice is a whole sublane tile -> cheap vreg select
        h = jnp.tanh(pre[t * batch_pad:(t + 1) * batch_pad, :] + hh)

    # --- final Linear on the last hidden state (lane-dense padded output) ---
    wfc_cp.wait()
    o_ref[...] = (jnp.dot(h.astype(jnp.bfloat16), wfc_vmem[...],
                          preferred_element_type=jnp.float32)
                  + bfc_ref[...])


def prepare_params(w_ih, b_ih, w_hh, b_hh, w_fc, b_fc):
    """One-time weight preprocessing (pad / transpose / cast to bf16).

    PyTorch conventions: w_ih (H, 187), w_hh (H, H), b_* (H,), w_fc (5, H), b_fc (5,)."""
    d_in = w_ih.shape[1]
    n_out = w_fc.shape[0]
    wih_t = jnp.pad(w_ih.astype(jnp.float32),
                    ((0, 0), (0, D_PAD - d_in))).T.astype(jnp.bfloat16)     # (D_PAD, H)
    whh_t = w_hh.astype(jnp.float32).T.astype(jnp.bfloat16)                 # (H, H)
    b = (b_ih.astype(jnp.float32) + b_hh.astype(jnp.float32))[None, :]      # (1, H) f32
    wfc_t = jnp.pad(w_fc.astype(jnp.float32).T,
                    ((0, 0), (0, N_OUT_PAD - n_out))).astype(jnp.bfloat16)  # (H, 128)
    bfc = jnp.pad(b_fc.astype(jnp.float32),
                  (0, N_OUT_PAD - n_out))[None, :]                          # (1, 128) f32
    return wih_t, whh_t, b, wfc_t, bfc


@jax.jit
def liquid_nn_forward(x, params):
    """x: (B, T, 187) float32; params from prepare_params()."""
    wih_t, whh_t, b, wfc_t, bfc = params
    B, T, d_in = x.shape

    # Glue (fused under jit): pad batch 2->8 (sublane-aligned per-step slices),
    # pad features 187->256 (zero W_ih columns keep the math identical),
    # go time-major, flatten to (T*B_PAD, D_PAD) bf16 rows.
    x_p = jnp.pad(x.astype(jnp.float32),
                  ((0, B_PAD - B), (0, 0), (0, D_PAD - d_in)))
    x2d = jnp.transpose(x_p, (1, 0, 2)).reshape(T * B_PAD, D_PAD).astype(jnp.bfloat16)

    out_pad = pl.pallas_call(
        functools.partial(rnn_fc_kernel, seq_len=T, batch_pad=B_PAD),
        out_shape=jax.ShapeDtypeStruct((B_PAD, N_OUT_PAD), jnp.float32),
        in_specs=[
            pl.BlockSpec(memory_space=pltpu.MemorySpace.VMEM),   # x2d
            pl.BlockSpec(memory_space=pltpu.MemorySpace.VMEM),   # wih
            pl.BlockSpec(memory_space=pltpu.MemorySpace.VMEM),   # b
            pl.BlockSpec(memory_space=pl.ANY),                   # whh (stays in HBM)
            pl.BlockSpec(memory_space=pl.ANY),                   # wfc (stays in HBM)
            pl.BlockSpec(memory_space=pltpu.MemorySpace.VMEM),   # bfc
        ],
        out_specs=pl.BlockSpec(memory_space=pltpu.MemorySpace.VMEM),
        scratch_shapes=[
            pltpu.VMEM((HIDDEN, HIDDEN), jnp.bfloat16),          # whh landing buffer
            pltpu.VMEM((HIDDEN, N_OUT_PAD), jnp.bfloat16),       # wfc landing buffer
            pltpu.SemaphoreType.DMA((2,)),
        ],
        compiler_params=pltpu.CompilerParams(has_side_effects=True),
        cost_estimate=pl.CostEstimate(flops=47_000_000,
                                      transcendentals=T * B_PAD * HIDDEN,
                                      bytes_accessed=1_000_000),
    )(x2d, wih_t, b, whh_t, wfc_t, bfc)

    return out_pad[:B, :N_OUT]


def reference_forward(x, w_ih, b_ih, w_hh, b_hh, w_fc, b_fc):
    """Pure-JAX f32 reference matching torch.nn.RNN(batch_first=True) + Linear."""
    B, T, _ = x.shape
    hp = jax.lax.Precision.HIGHEST
    h = jnp.zeros((B, w_hh.shape[0]), jnp.float32)
    for t in range(T):
        h = jnp.tanh(jnp.dot(x[:, t, :], w_ih.T, precision=hp) + b_ih
                     + jnp.dot(h, w_hh.T, precision=hp) + b_hh)
    return jnp.dot(h, w_fc.T, precision=hp) + b_fc


if __name__ == "__main__":
    key = jax.random.PRNGKey(0)
    k_x, k1, k2, k3, k4, k5, k6 = jax.random.split(key, 7)

    # Deterministic "PyTorch-like" init: U(-1/sqrt(H), 1/sqrt(H))
    bound = 1.0 / jnp.sqrt(jnp.float32(HIDDEN))
    w_ih = jax.random.uniform(k1, (HIDDEN, D_IN), jnp.float32, -bound, bound)
    w_hh = jax.random.uniform(k2, (HIDDEN, HIDDEN), jnp.float32, -bound, bound)
    b_ih = jax.random.uniform(k3, (HIDDEN,), jnp.float32, -bound, bound)
    b_hh = jax.random.uniform(k4, (HIDDEN,), jnp.float32, -bound, bound)
    w_fc = jax.random.uniform(k5, (N_OUT, HIDDEN), jnp.float32, -bound, bound)
    b_fc = jax.random.uniform(k6, (N_OUT,), jnp.float32, -bound, bound)

    x = jax.random.normal(k_x, (BATCH, SEQ, D_IN), jnp.float32)

    params = prepare_params(w_ih, b_ih, w_hh, b_hh, w_fc, b_fc)  # done once
    out = liquid_nn_forward(x, params)
    out = jax.block_until_ready(out)

    ref = reference_forward(x, w_ih, b_ih, w_hh, b_hh, w_fc, b_fc)
    assert out.shape == (BATCH, N_OUT)
    # All weight operands are bf16 (f32 accumulation); over 8 contractive tanh
    # steps the observed error is ~1e-3 scale — 3e-2 gives ample headroom while
    # still catching layout / indexing bugs (output magnitude ~0.3).
    assert jnp.allclose(out, ref, atol=3e-2, rtol=3e-2)

    print("KERNEL_OK")
</pallas_src>

<mosaic_0001>
module attributes {stable_mosaic.version = 11 : i64} {
  func.func @rnn_fc_kernel(%arg0: memref<64x256xbf16, #tpu.memory_space<vmem>>, %arg1: memref<256x512xbf16, #tpu.memory_space<vmem>>, %arg2: memref<1x512xf32, #tpu.memory_space<vmem>>, %arg3: memref<512x512xbf16, #tpu.memory_space<any>>, %arg4: memref<512x128xbf16, #tpu.memory_space<any>>, %arg5: memref<1x128xf32, #tpu.memory_space<vmem>>, %arg6: memref<8x128xf32, #tpu.memory_space<vmem>>, %arg7: memref<512x512xbf16, #tpu.memory_space<vmem>>, %arg8: memref<512x128xbf16, #tpu.memory_space<vmem>>, %arg9: memref<2x!tpu.dma_semaphore, #tpu.memory_space<semaphore_mem>>) attributes {dimension_semantics = [], scalar_prefetch = 0 : i64, scratch_operands = 3 : i64, tpu.core_type = #tpu.core_type<tc>} {
    %c0_i32 = arith.constant 0 : i32
    %0 = tpu.memref_slice %arg9[%c0_i32] : memref<2x!tpu.dma_semaphore, #tpu.memory_space<semaphore_mem>> -> memref<1x!tpu.dma_semaphore, #tpu.memory_space<semaphore_mem>>
    %1 = tpu.memref_squeeze %0 : memref<1x!tpu.dma_semaphore, #tpu.memory_space<semaphore_mem>> -> memref<!tpu.dma_semaphore, #tpu.memory_space<semaphore_mem>>
    tpu.enqueue_dma source(%arg3 : memref<512x512xbf16, #tpu.memory_space<any>>) target(%arg7 : memref<512x512xbf16, #tpu.memory_space<vmem>>) target_semaphore(%1 : memref<!tpu.dma_semaphore, #tpu.memory_space<semaphore_mem>>)
    %c1_i32 = arith.constant 1 : i32
    %2 = tpu.memref_slice %arg9[%c1_i32] : memref<2x!tpu.dma_semaphore, #tpu.memory_space<semaphore_mem>> -> memref<1x!tpu.dma_semaphore, #tpu.memory_space<semaphore_mem>>
    %3 = tpu.memref_squeeze %2 : memref<1x!tpu.dma_semaphore, #tpu.memory_space<semaphore_mem>> -> memref<!tpu.dma_semaphore, #tpu.memory_space<semaphore_mem>>
    tpu.enqueue_dma source(%arg4 : memref<512x128xbf16, #tpu.memory_space<any>>) target(%arg8 : memref<512x128xbf16, #tpu.memory_space<vmem>>) target_semaphore(%3 : memref<!tpu.dma_semaphore, #tpu.memory_space<semaphore_mem>>)
    %c0 = arith.constant 0 : index
    %c0_0 = arith.constant 0 : index
    %4 = vector.load %arg0[%c0, %c0_0] : memref<64x256xbf16, #tpu.memory_space<vmem>>, vector<64x256xbf16>
    %c0_1 = arith.constant 0 : index
    %c0_2 = arith.constant 0 : index
    %5 = vector.load %arg1[%c0_1, %c0_2] : memref<256x512xbf16, #tpu.memory_space<vmem>>, vector<256x512xbf16>
    %cst = arith.constant dense<0.000000e+00> : vector<64x512xf32>
    %6 = tpu.matmul %4, %5, %cst {dimension_numbers = #tpu.dot_dimension_numbers<[1], [0], [0], [1], [0, 0, 1, 1], [], []>} : vector<64x256xbf16>, vector<256x512xbf16>, vector<64x512xf32> -> vector<64x512xf32>
    %c0_3 = arith.constant 0 : index
    %c0_4 = arith.constant 0 : index
    %7 = vector.load %arg2[%c0_3, %c0_4] : memref<1x512xf32, #tpu.memory_space<vmem>>, vector<1x512xf32>
    %8 = vector.broadcast %7 : vector<1x512xf32> to vector<64x512xf32>
    %9 = arith.addf %6, %8 : vector<64x512xf32>
    %10 = vector.extract_strided_slice %9 {offsets = [0, 0], sizes = [8, 512], strides = [1, 1]} : vector<64x512xf32> to vector<8x512xf32>
    %11 = math.tanh %10 : vector<8x512xf32>
    %c0_i32_5 = arith.constant 0 : i32
    %12 = tpu.memref_slice %arg9[%c0_i32_5] : memref<2x!tpu.dma_semaphore, #tpu.memory_space<semaphore_mem>> -> memref<1x!tpu.dma_semaphore, #tpu.memory_space<semaphore_mem>>
    %13 = tpu.memref_squeeze %12 : memref<1x!tpu.dma_semaphore, #tpu.memory_space<semaphore_mem>> -> memref<!tpu.dma_semaphore, #tpu.memory_space<semaphore_mem>>
    tpu.wait_dma2 semaphore(%13 : memref<!tpu.dma_semaphore, #tpu.memory_space<semaphore_mem>>) src(%arg3 : memref<512x512xbf16, #tpu.memory_space<any>>) dst(%arg7 : memref<512x512xbf16, #tpu.memory_space<vmem>>)
    %14 = arith.truncf %11 : vector<8x512xf32> to vector<8x512xbf16>
    %c0_6 = arith.constant 0 : index
    %c0_7 = arith.constant 0 : index
    %15 = vector.load %arg7[%c0_6, %c0_7] : memref<512x512xbf16, #tpu.memory_space<vmem>>, vector<512x512xbf16>
    %cst_8 = arith.constant dense<0.000000e+00> : vector<8x512xf32>
    %16 = tpu.matmul %14, %15, %cst_8 {dimension_numbers = #tpu.dot_dimension_numbers<[1], [0], [0], [1], [0, 0, 1, 1], [], []>} : vector<8x512xbf16>, vector<512x512xbf16>, vector<8x512xf32> -> vector<8x512xf32>
    %17 = vector.extract_strided_slice %9 {offsets = [8, 0], sizes = [8, 512], strides = [1, 1]} : vector<64x512xf32> to vector<8x512xf32>
    %18 = arith.addf %17, %16 : vector<8x512xf32>
    %19 = math.tanh %18 : vector<8x512xf32>
    %20 = arith.truncf %19 : vector<8x512xf32> to vector<8x512xbf16>
    %c0_9 = arith.constant 0 : index
    %c0_10 = arith.constant 0 : index
    %21 = vector.load %arg7[%c0_9, %c0_10] : memref<512x512xbf16, #tpu.memory_space<vmem>>, vector<512x512xbf16>
    %cst_11 = arith.constant dense<0.000000e+00> : vector<8x512xf32>
    %22 = tpu.matmul %20, %21, %cst_11 {dimension_numbers = #tpu.dot_dimension_numbers<[1], [0], [0], [1], [0, 0, 1, 1], [], []>} : vector<8x512xbf16>, vector<512x512xbf16>, vector<8x512xf32> -> vector<8x512xf32>
    %23 = vector.extract_strided_slice %9 {offsets = [16, 0], sizes = [8, 512], strides = [1, 1]} : vector<64x512xf32> to vector<8x512xf32>
    %24 = arith.addf %23, %22 : vector<8x512xf32>
    %25 = math.tanh %24 : vector<8x512xf32>
    %26 = arith.truncf %25 : vector<8x512xf32> to vector<8x512xbf16>
    %c0_12 = arith.constant 0 : index
    %c0_13 = arith.constant 0 : index
    %27 = vector.load %arg7[%c0_12, %c0_13] : memref<512x512xbf16, #tpu.memory_space<vmem>>, vector<512x512xbf16>
    %cst_14 = arith.constant dense<0.000000e+00> : vector<8x512xf32>
    %28 = tpu.matmul %26, %27, %cst_14 {dimension_numbers = #tpu.dot_dimension_numbers<[1], [0], [0], [1], [0, 0, 1, 1], [], []>} : vector<8x512xbf16>, vector<512x512xbf16>, vector<8x512xf32> -> vector<8x512xf32>
    %29 = vector.extract_strided_slice %9 {offsets = [24, 0], sizes = [8, 512], strides = [1, 1]} : vector<64x512xf32> to vector<8x512xf32>
    %30 = arith.addf %29, %28 : vector<8x512xf32>
    %31 = math.tanh %30 : vector<8x512xf32>
    %32 = arith.truncf %31 : vector<8x512xf32> to vector<8x512xbf16>
    %c0_15 = arith.constant 0 : index
    %c0_16 = arith.constant 0 : index
    %33 = vector.load %arg7[%c0_15, %c0_16] : memref<512x512xbf16, #tpu.memory_space<vmem>>, vector<512x512xbf16>
    %cst_17 = arith.constant dense<0.000000e+00> : vector<8x512xf32>
    %34 = tpu.matmul %32, %33, %cst_17 {dimension_numbers = #tpu.dot_dimension_numbers<[1], [0], [0], [1], [0, 0, 1, 1], [], []>} : vector<8x512xbf16>, vector<512x512xbf16>, vector<8x512xf32> -> vector<8x512xf32>
    %35 = vector.extract_strided_slice %9 {offsets = [32, 0], sizes = [8, 512], strides = [1, 1]} : vector<64x512xf32> to vector<8x512xf32>
    %36 = arith.addf %35, %34 : vector<8x512xf32>
    %37 = math.tanh %36 : vector<8x512xf32>
    %38 = arith.truncf %37 : vector<8x512xf32> to vector<8x512xbf16>
    %c0_18 = arith.constant 0 : index
    %c0_19 = arith.constant 0 : index
    %39 = vector.load %arg7[%c0_18, %c0_19] : memref<512x512xbf16, #tpu.memory_space<vmem>>, vector<512x512xbf16>
    %cst_20 = arith.constant dense<0.000000e+00> : vector<8x512xf32>
    %40 = tpu.matmul %38, %39, %cst_20 {dimension_numbers = #tpu.dot_dimension_numbers<[1], [0], [0], [1], [0, 0, 1, 1], [], []>} : vector<8x512xbf16>, vector<512x512xbf16>, vector<8x512xf32> -> vector<8x512xf32>
    %41 = vector.extract_strided_slice %9 {offsets = [40, 0], sizes = [8, 512], strides = [1, 1]} : vector<64x512xf32> to vector<8x512xf32>
    %42 = arith.addf %41, %40 : vector<8x512xf32>
    %43 = math.tanh %42 : vector<8x512xf32>
    %44 = arith.truncf %43 : vector<8x512xf32> to vector<8x512xbf16>
    %c0_21 = arith.constant 0 : index
    %c0_22 = arith.constant 0 : index
    %45 = vector.load %arg7[%c0_21, %c0_22] : memref<512x512xbf16, #tpu.memory_space<vmem>>, vector<512x512xbf16>
    %cst_23 = arith.constant dense<0.000000e+00> : vector<8x512xf32>
    %46 = tpu.matmul %44, %45, %cst_23 {dimension_numbers = #tpu.dot_dimension_numbers<[1], [0], [0], [1], [0, 0, 1, 1], [], []>} : vector<8x512xbf16>, vector<512x512xbf16>, vector<8x512xf32> -> vector<8x512xf32>
    %47 = vector.extract_strided_slice %9 {offsets = [48, 0], sizes = [8, 512], strides = [1, 1]} : vector<64x512xf32> to vector<8x512xf32>
    %48 = arith.addf %47, %46 : vector<8x512xf32>
    %49 = math.tanh %48 : vector<8x512xf32>
    %50 = arith.truncf %49 : vector<8x512xf32> to vector<8x512xbf16>
    %c0_24 = arith.constant 0 : index
    %c0_25 = arith.constant 0 : index
    %51 = vector.load %arg7[%c0_24, %c0_25] : memref<512x512xbf16, #tpu.memory_space<vmem>>, vector<512x512xbf16>
    %cst_26 = arith.constant dense<0.000000e+00> : vector<8x512xf32>
    %52 = tpu.matmul %50, %51, %cst_26 {dimension_numbers = #tpu.dot_dimension_numbers<[1], [0], [0], [1], [0, 0, 1, 1], [], []>} : vector<8x512xbf16>, vector<512x512xbf16>, vector<8x512xf32> -> vector<8x512xf32>
    %53 = vector.extract_strided_slice %9 {offsets = [56, 0], sizes = [8, 512], strides = [1, 1]} : vector<64x512xf32> to vector<8x512xf32>
    %54 = arith.addf %53, %52 : vector<8x512xf32>
    %55 = math.tanh %54 : vector<8x512xf32>
    %c1_i32_27 = arith.constant 1 : i32
    %56 = tpu.memref_slice %arg9[%c1_i32_27] : memref<2x!tpu.dma_semaphore, #tpu.memory_space<semaphore_mem>> -> memref<1x!tpu.dma_semaphore, #tpu.memory_space<semaphore_mem>>
    %57 = tpu.memref_squeeze %56 : memref<1x!tpu.dma_semaphore, #tpu.memory_space<semaphore_mem>> -> memref<!tpu.dma_semaphore, #tpu.memory_space<semaphore_mem>>
    tpu.wait_dma2 semaphore(%57 : memref<!tpu.dma_semaphore, #tpu.memory_space<semaphore_mem>>) src(%arg4 : memref<512x128xbf16, #tpu.memory_space<any>>) dst(%arg8 : memref<512x128xbf16, #tpu.memory_space<vmem>>)
    %58 = arith.truncf %55 : vector<8x512xf32> to vector<8x512xbf16>
    %c0_28 = arith.constant 0 : index
    %c0_29 = arith.constant 0 : index
    %59 = vector.load %arg8[%c0_28, %c0_29] : memref<512x128xbf16, #tpu.memory_space<vmem>>, vector<512x128xbf16>
    %cst_30 = arith.constant dense<0.000000e+00> : vector<8x128xf32>
    %60 = tpu.matmul %58, %59, %cst_30 {dimension_numbers = #tpu.dot_dimension_numbers<[1], [0], [0], [1], [0, 0, 1, 1], [], []>} : vector<8x512xbf16>, vector<512x128xbf16>, vector<8x128xf32> -> vector<8x128xf32>
    %c0_31 = arith.constant 0 : index
    %c0_32 = arith.constant 0 : index
    %61 = vector.load %arg5[%c0_31, %c0_32] : memref<1x128xf32, #tpu.memory_space<vmem>>, vector<1x128xf32>
    %62 = vector.broadcast %61 : vector<1x128xf32> to vector<8x128xf32>
    %63 = arith.addf %60, %62 : vector<8x128xf32>
    %c0_33 = arith.constant 0 : index
    %c0_34 = arith.constant 0 : index
    %64 = vector.load %arg6[%c0_33, %c0_34] : memref<8x128xf32, #tpu.memory_space<vmem>>, vector<8x128xf32>
    tpu.vector_store %arg6[%c0_33, %c0_34], %63 {strides = array<i32>} : memref<8x128xf32, #tpu.memory_space<vmem>>, vector<8x128xf32>,
    return
  }
}

</mosaic_0001>

<llo_original>
// kernel: liquid_nn_forward.1
$region0: #{liquid_nn_forward.1}
  #allocation0 [shape = 'u32[]', space=smem, size = 0x4, offset = 0x4, fixed_abs, tag = 'smem constant byte address 0x4 - core index']
  #allocation1 [shape = 'u32[144,128]{1,0:T(1,128)}', space=vmem, size = 0x12000, scoped, tag = 'internal scratch']
  #allocation2 [shape = 'bf16[512,512]{1,0:T(16,128)(2,1)}', space=vmem, size = 0x80000, scoped, tag = 'scratch operand']
  #allocation3 [shape = 'bf16[512,128]{1,0:T(16,128)(2,1)}', space=vmem, size = 0x20000, scoped, tag = 'scratch operand']
  #allocation4 [shape = 's32[2]{0}', space=sflag, size = 0x8, scoped, tag = 'scratch operand']
  #allocation7 [shape = 's32[]', space=sflag, size = 0x4, offset = 0, fixed_abs, tag = 'sflag constant byte address 0x0 - dummy sync flag']
  #allocation9 [shape = 's32[]', space=sflag, size = 0x4, offset = 0, fixed_abs, tag = 'sflag constant byte address 0x0 - dummy sync flag']
  %s0 = inlined_call_operand.vmem [shape: bf16[64,256], index: 0, kind: input, shape index: {}]
  %s1 = inlined_call_operand.hbm [shape: bf16[256,512], index: 1, kind: input, shape index: {}]
  %s2 = inlined_call_operand.vmem [shape: f32[1,512], index: 2, kind: input, shape index: {}]
  %s3 = inlined_call_operand.hbm [shape: bf16[512,512], index: 3, kind: input, shape index: {}]
  %s4 = inlined_call_operand.vmem [shape: bf16[512,128], index: 4, kind: input, shape index: {}]
  %s5 = inlined_call_operand.vmem [shape: f32[1,128], index: 5, kind: input, shape index: {}]
  %s6 = inlined_call_operand.vmem [shape: f32[8,128], index: 6, kind: output, shape index: {}]
  %s7 = sld [smem:[#allocation0]]
  $region64: #{liquid_nn_forward.1} parent=0
    _
  %s9 = ssub.s32 1, %s7
  %s10 = scalar_select 0, %s9, %s7
  $region1: #{liquid_nn_forward.1} parent=0
    #allocation5 [shape = 'u8[262144]{0}', space=vmem, size = 0x40000, scoped, tag = 'input window, operand 1, single buffered']
    #allocation6 [shape = 's32[1]{0}', space=sflag, size = 0x4, scoped, tag = 'scoped memory for liquid_nn_forward.1']
    #allocation8 [shape = 'u32[9]{0}', space=smem, size = 0x24, scoped, tag = 'DMA stride descriptor']
    %11 = vsyncpa [#allocation6], 0
    // Predicated region
    $region2: #{liquid_nn_forward.1} parent=1 // pred_check
      _
    $region3: #{liquid_nn_forward.1} parent=1 // pred_check_branch
      %13 = sbr.rel (0) target = $region5
    $region4: #{liquid_nn_forward.1} parent=1 // pred_region
      _
    $region5: #{liquid_nn_forward.1} parent=1 // pred_fallthru
      _
    // Predicated region
    $region6: #{liquid_nn_forward.1} parent=1 // pred_check
      _
    $region7: #{liquid_nn_forward.1} parent=1 // pred_check_branch
      %15 = sbr.rel (0) target = $region9
    $region8: #{liquid_nn_forward.1} parent=1 // pred_region
      %s17 = ssub.s32 8192, 8192
      %18 = vsyncadd [#allocation6], %s17
      %s19 = sshll.u32 [#allocation5], 4
      %s20 = int_to_ptr.vmem [resolvable:$true] %s19
      %25 = dma.hbm_to_vmem [thread:$0]  %s1, 8192, %s20, [#allocation6], 256, 256, 16
    $region9: #{liquid_nn_forward.1} parent=1 // pred_fallthru
      _
    // Predicated region
    $region10: #{liquid_nn_forward.1} parent=1 // pred_check
      _
    $region11: #{liquid_nn_forward.1} parent=1 // pred_check_branch
      %27 = sbr.rel (0) target = $region13
    $region12: #{liquid_nn_forward.1} parent=1 // pred_region
      _
    $region13: #{liquid_nn_forward.1} parent=1 // pred_fallthru
      _
    // Predicated region
    $region14: #{liquid_nn_forward.1} parent=1 // pred_check
      _
    $region15: #{liquid_nn_forward.1} parent=1 // pred_check_branch
      %29 = sbr.rel (0) target = $region17
    $region16: #{liquid_nn_forward.1} parent=1 // pred_region
      _
    $region17: #{liquid_nn_forward.1} parent=1 // pred_fallthru
      _
    // Predicated region
    $region18: #{liquid_nn_forward.1} parent=1 // pred_check
      _
    $region19: #{liquid_nn_forward.1} parent=1 // pred_check_branch
      %31 = sbr.rel (0) target = $region21
    $region20: #{liquid_nn_forward.1} parent=1 // pred_region
      %32 = dma.done [#allocation6], 8192
    $region21: #{liquid_nn_forward.1} parent=1 // pred_fallthru
      _
    %s35 = sshll.u32 1, 14
    %s36 = sxor.u32 4294967295, %s35
    %s38 = sld [smem:[#allocation0]]
    %s39 = sadd.s32 2, %s38
    %s41 = sshll.u32 7, 26
    %s42 = sxor.u32 4294967295, %s41
    %s43 = sand.u32 0, %s42
    %s44 = sshll.u32 %s39, 26
    %s45 = sor.u32 %s43, %s44
    %s46 = sshll.u32 [#allocation2], 4
    %s47 = int_to_ptr.vmem [resolvable:$true] %s46
    %50 = sst [smem:[#allocation8]] 512
    %s51 = scalar_lea.smem [#allocation8], 1
    %52 = sst [smem:[%s51]] 512
    %s53 = scalar_lea.smem [#allocation8], 2
    %54 = sst [smem:[%s53]] 4
    %s55 = scalar_lea.smem [#allocation8], 3
    %56 = sst [smem:[%s55]] 64
    %s57 = scalar_lea.smem [#allocation8], 4
    %58 = sst [smem:[%s57]] 128
    %s59 = scalar_lea.smem [#allocation8], 5
    %60 = sst [smem:[%s59]] 2
    %s61 = scalar_lea.smem [#allocation8], 6
    %62 = sst [smem:[%s61]] 256
    %s63 = scalar_lea.smem [#allocation8], 7
    %64 = sst [smem:[%s63]] 64
    %s65 = scalar_lea.smem [#allocation8], 8
    %66 = sst [smem:[%s65]] 4
    %68 = dma.general %s3, 16384, %s47, [#allocation4], [#allocation7], [#allocation8], %s45, 0
    %s69 = scalar_lea.sflag [#allocation4], 1
    %p71 = scmp.lt.u32.totalorder 256, 8
    %p72 = pneg %p71
    // Predicated region
    $region22: #{liquid_nn_forward.1} parent=1 // pred_check
      _
    $region23: #{liquid_nn_forward.1} parent=1 // pred_check_branch
      %74 = sbr.rel (%p71) target = $region25
    $region24: #{liquid_nn_forward.1} parent=1 // pred_region
      %s89 = sand.u32 256, 7
      %p90 = scmp.eq.s32.totalorder %s89, 0
      // Predicated region
      $region37: #{liquid_nn_forward.1} parent=24 // pred_check
        %p91 = pneg %p90
      $region38: #{liquid_nn_forward.1} parent=24 // pred_check_branch
        %93 = sbr.rel (%p91) target = $region40
      $region39: #{liquid_nn_forward.1} parent=24 // pred_region
        loop: start=0, step=1, limit=1
        $region41: #{liquid_nn_forward.1} parent=39 // loop_pre_header
          _
        $region42: #{liquid_nn_forward.1} parent=39 // loop_header
          %s95 = sphi 0, %s99
          %p96 = scmp.ge.s32.totalorder %s95, 1
          %s100 = sphi %s4, %s4
          %s101 = sphi [#allocation3], [#allocation3]
        $region43: #{liquid_nn_forward.1} parent=39 // loop_header_branch
          %98 = sbr.rel (%p96) target = $region47
        $region44: #{liquid_nn_forward.1} parent=39 // loop_body
          %v102 = vld [vmem:[%s100] sm:$0xff]
          %103 = vst [vmem:[%s101] sm:$0xff] %v102
          %v104 = vld [vmem:[%s100 + $0x8] sm:$0xff]
          %105 = vst [vmem:[%s101 + $0x8] sm:$0xff] %v104
          %v106 = vld [vmem:[%s100 + $0x10] sm:$0xff]
          %107 = vst [vmem:[%s101 + $0x10] sm:$0xff] %v106
          %v108 = vld [vmem:[%s100 + $0x18] sm:$0xff]
          %109 = vst [vmem:[%s101 + $0x18] sm:$0xff] %v108
          %v110 = vld [vmem:[%s100 + $0x20] sm:$0xff]
          %111 = vst [vmem:[%s101 + $0x20] sm:$0xff] %v110
          %v112 = vld [vmem:[%s100 + $0x28] sm:$0xff]
          %113 = vst [vmem:[%s101 + $0x28] sm:$0xff] %v112
          %v114 = vld [vmem:[%s100 + $0x30] sm:$0xff]
          %115 = vst [vmem:[%s101 + $0x30] sm:$0xff] %v114
          %v116 = vld [vmem:[%s100 + $0x38] sm:$0xff]
          %117 = vst [vmem:[%s101 + $0x38] sm:$0xff] %v116
          %v118 = vld [vmem:[%s100 + $0x40] sm:$0xff]
          %119 = vst [vmem:[%s101 + $0x40] sm:$0xff] %v118
          %v120 = vld [vmem:[%s100 + $0x48] sm:$0xff]
          %121 = vst [vmem:[%s101 + $0x48] sm:$0xff] %v120
          %v122 = vld [vmem:[%s100 + $0x50] sm:$0xff]
          %123 = vst [vmem:[%s101 + $0x50] sm:$0xff] %v122
          %v124 = vld [vmem:[%s100 + $0x58] sm:$0xff]
          %125 = vst [vmem:[%s101 + $0x58] sm:$0xff] %v124
          %v126 = vld [vmem:[%s100 + $0x60] sm:$0xff]
          %127 = vst [vmem:[%s101 + $0x60] sm:$0xff] %v126
          %v128 = vld [vmem:[%s100 + $0x68] sm:$0xff]
          %129 = vst [vmem:[%s101 + $0x68] sm:$0xff] %v128
          %v130 = vld [vmem:[%s100 + $0x70] sm:$0xff]
          %131 = vst [vmem:[%s101 + $0x70] sm:$0xff] %v130
          %v132 = vld [vmem:[%s100 + $0x78] sm:$0xff]
          %133 = vst [vmem:[%s101 + $0x78] sm:$0xff] %v132
          %v134 = vld [vmem:[%s100 + $0x80] sm:$0xff]
          %135 = vst [vmem:[%s101 + $0x80] sm:$0xff] %v134
          %v136 = vld [vmem:[%s100 + $0x88] sm:$0xff]
          %137 = vst [vmem:[%s101 + $0x88] sm:$0xff] %v136
          %v138 = vld [vmem:[%s100 + $0x90] sm:$0xff]
          %139 = vst [vmem:[%s101 + $0x90] sm:$0xff] %v138
          %v140 = vld [vmem:[%s100 + $0x98] sm:$0xff]
          %141 = vst [vmem:[%s101 + $0x98] sm:$0xff] %v140
          %v142 = vld [vmem:[%s100 + $0xa0] sm:$0xff]
          %143 = vst [vmem:[%s101 + $0xa0] sm:$0xff] %v142
          %v144 = vld [vmem:[%s100 + $0xa8] sm:$0xff]
          %145 = vst [vmem:[%s101 + $0xa8] sm:$0xff] %v144
          %v146 = vld [vmem:[%s100 + $0xb0] sm:$0xff]
          %147 = vst [vmem:[%s101 + $0xb0] sm:$0xff] %v146
          %v148 = vld [vmem:[%s100 + $0xb8] sm:$0xff]
          %149 = vst [vmem:[%s101 + $0xb8] sm:$0xff] %v148
          %v150 = vld [vmem:[%s100 + $0xc0] sm:$0xff]
          %151 = vst [vmem:[%s101 + $0xc0] sm:$0xff] %v150
          %v152 = vld [vmem:[%s100 + $0xc8] sm:$0xff]
          %153 = vst [vmem:[%s101 + $0xc8] sm:$0xff] %v152
          %v154 = vld [vmem:[%s100 + $0xd0] sm:$0xff]
          %155 = vst [vmem:[%s101 + $0xd0] sm:$0xff] %v154
          %v156 = vld [vmem:[%s100 + $0xd8] sm:$0xff]
          %157 = vst [vmem:[%s101 + $0xd8] sm:$0xff] %v156
          %v158 = vld [vmem:[%s100 + $0xe0] sm:$0xff]
          %159 = vst [vmem:[%s101 + $0xe0] sm:$0xff] %v158
          %v160 = vld [vmem:[%s100 + $0xe8] sm:$0xff]
          %161 = vst [vmem:[%s101 + $0xe8] sm:$0xff] %v160
          %v162 = vld [vmem:[%s100 + $0xf0] sm:$0xff]
          %163 = vst [vmem:[%s101 + $0xf0] sm:$0xff] %v162
          %v164 = vld [vmem:[%s100 + $0xf8] sm:$0xff]
          %165 = vst [vmem:[%s101 + $0xf8] sm:$0xff] %v164
        $region45: #{liquid_nn_forward.1} parent=39 // loop_footer
          %s99 = sadd.s32 1, %s95
        $region46: #{liquid_nn_forward.1} parent=39 // loop_footer_branch
          %94 = sbr.rel target = $region42
        $region47: #{liquid_nn_forward.1} parent=39 // loop_exit
          _
      $region40: #{liquid_nn_forward.1} parent=24 // pred_fallthru
        _
      %p166 = pneg %p90
      // Predicated region
      $region48: #{liquid_nn_forward.1} parent=24 // pred_check
        _
      $region49: #{liquid_nn_forward.1} parent=24 // pred_check_branch
        %168 = sbr.rel (%p90) target = $region51
      $region50: #{liquid_nn_forward.1} parent=24 // pred_region
        %s169 = sand.u32 256, 7
      $region51: #{liquid_nn_forward.1} parent=24 // pred_fallthru
        _
    $region25: #{liquid_nn_forward.1} parent=1 // pred_fallthru
      _
    // Predicated region
    $region26: #{liquid_nn_forward.1} parent=1 // pred_check
      %p75 = pneg %p71
    $region27: #{liquid_nn_forward.1} parent=1 // pred_check_branch
      %77 = sbr.rel (%p75) target = $region29
    $region28: #{liquid_nn_forward.1} parent=1 // pred_region
      %s78 = sshllo.u32 0, 256
      loop: start=0, step=1, limit=1
      $region30: #{liquid_nn_forward.1} parent=28 // loop_pre_header
        _
      $region31: #{liquid_nn_forward.1} parent=28 // loop_header
        %s80 = sphi 0, %s84
        %p81 = scmp.ge.s32.totalorder %s80, 1
        %s85 = sphi %s4, %s4
        %s86 = sphi [#allocation3], [#allocation3]
      $region32: #{liquid_nn_forward.1} parent=28 // loop_header_branch
        %83 = sbr.rel (%p81) target = $region36
      $region33: #{liquid_nn_forward.1} parent=28 // loop_body
        %v87 = vld [vmem:[%s85] sm:%s78]
        %88 = vst [vmem:[%s86] sm:%s78] %v87
      $region34: #{liquid_nn_forward.1} parent=28 // loop_footer
        %s84 = sadd.s32 1, %s80
      $region35: #{liquid_nn_forward.1} parent=28 // loop_footer_branch
        %79 = sbr.rel target = $region31
      $region36: #{liquid_nn_forward.1} parent=28 // loop_exit
        _
    $region29: #{liquid_nn_forward.1} parent=1 // pred_fallthru
      _
    // Predicated region
    $region52: #{liquid_nn_forward.1} parent=1 // pred_check
      _
    $region53: #{liquid_nn_forward.1} parent=1 // pred_check_branch
      %172 = sbr.rel (0) target = $region55
    $region54: #{liquid_nn_forward.1} parent=1 // pred_region
      %173 = vsyncadd %s69, 4096
    $region55: #{liquid_nn_forward.1} parent=1 // pred_fallthru
      _
    %v174 = vld [vmem:[%s0] sm:$0xff]
    %v175 = vld [vmem:[%s0 + $0x8] sm:$0xff]
    %v176 = vld [vmem:[%s0 + $0x10] sm:$0xff]
    %v177 = vld [vmem:[%s0 + $0x18] sm:$0xff]
    %v178 = vld [vmem:[%s0 + $0x20] sm:$0xff]
    %v179 = vld [vmem:[%s0 + $0x28] sm:$0xff]
    %v180 = vld [vmem:[%s0 + $0x30] sm:$0xff]
    %v181 = vld [vmem:[%s0 + $0x38] sm:$0xff]
    %v182 = vld [vmem:[#allocation5] sm:$0xff]
    %v183 = vld [vmem:[#allocation5 + $0x8] sm:$0xff]
    %v184 = vld [vmem:[#allocation5 + $0x10] sm:$0xff]
    %v185 = vld [vmem:[#allocation5 + $0x18] sm:$0xff]
    %v186 = vld [vmem:[#allocation5 + $0x20] sm:$0xff]
    %v187 = vld [vmem:[#allocation5 + $0x28] sm:$0xff]
    %v188 = vld [vmem:[#allocation5 + $0x30] sm:$0xff]
    %v189 = vld [vmem:[#allocation5 + $0x38] sm:$0xff]
    %v190 = vld [vmem:[#allocation5 + $0x40] sm:$0xff]
    %v191 = vld [vmem:[#allocation5 + $0x48] sm:$0xff]
    %v192 = vld [vmem:[#allocation5 + $0x50] sm:$0xff]
    %v193 = vld [vmem:[#allocation5 + $0x58] sm:$0xff]
    %v194 = vld [vmem:[#allocation5 + $0x60] sm:$0xff]
    %v195 = vld [vmem:[#allocation5 + $0x68] sm:$0xff]
    %v196 = vld [vmem:[#allocation5 + $0x70] sm:$0xff]
    %v197 = vld [vmem:[#allocation5 + $0x78] sm:$0xff]
    %v198 = vld [vmem:[#allocation5 + $0x80] sm:$0xff]
    %v199 = vld [vmem:[#allocation5 + $0x88] sm:$0xff]
    %v200 = vld [vmem:[#allocation5 + $0x90] sm:$0xff]
    %v201 = vld [vmem:[#allocation5 + $0x98] sm:$0xff]
    %v202 = vld [vmem:[#allocation5 + $0xa0] sm:$0xff]
    %v203 = vld [vmem:[#allocation5 + $0xa8] sm:$0xff]
    %v204 = vld [vmem:[#allocation5 + $0xb0] sm:$0xff]
    %v205 = vld [vmem:[#allocation5 + $0xb8] sm:$0xff]
    %v206 = vld [vmem:[#allocation5 + $0xc0] sm:$0xff]
    %v207 = vld [vmem:[#allocation5 + $0xc8] sm:$0xff]
    %v208 = vld [vmem:[#allocation5 + $0xd0] sm:$0xff]
    %v209 = vld [vmem:[#allocation5 + $0xd8] sm:$0xff]
    %v210 = vld [vmem:[#allocation5 + $0xe0] sm:$0xff]
    %v211 = vld [vmem:[#allocation5 + $0xe8] sm:$0xff]
    %v212 = vld [vmem:[#allocation5 + $0xf0] sm:$0xff]
    %v213 = vld [vmem:[#allocation5 + $0xf8] sm:$0xff]
    %v214 = vld [vmem:[#allocation5 + $0x100] sm:$0xff]
    %v215 = vld [vmem:[#allocation5 + $0x108] sm:$0xff]
    %v216 = vld [vmem:[#allocation5 + $0x110] sm:$0xff]
    %v217 = vld [vmem:[#allocation5 + $0x118] sm:$0xff]
    %v218 = vld [vmem:[#allocation5 + $0x120] sm:$0xff]
    %v219 = vld [vmem:[#allocation5 + $0x128] sm:$0xff]
    %v220 = vld [vmem:[#allocation5 + $0x130] sm:$0xff]
    %v221 = vld [vmem:[#allocation5 + $0x138] sm:$0xff]
    %v222 = vld [vmem:[#allocation5 + $0x140] sm:$0xff]
    %v223 = vld [vmem:[#allocation5 + $0x148] sm:$0xff]
    %v224 = vld [vmem:[#allocation5 + $0x150] sm:$0xff]
    %v225 = vld [vmem:[#allocation5 + $0x158] sm:$0xff]
    %v226 = vld [vmem:[#allocation5 + $0x160] sm:$0xff]
    %v227 = vld [vmem:[#allocation5 + $0x168] sm:$0xff]
    %v228 = vld [vmem:[#allocation5 + $0x170] sm:$0xff]
    %v229 = vld [vmem:[#allocation5 + $0x178] sm:$0xff]
    %v230 = vld [vmem:[#allocation5 + $0x180] sm:$0xff]
    %v231 = vld [vmem:[#allocation5 + $0x188] sm:$0xff]
    %v232 = vld [vmem:[#allocation5 + $0x190] sm:$0xff]
    %v233 = vld [vmem:[#allocation5 + $0x198] sm:$0xff]
    %v234 = vld [vmem:[#allocation5 + $0x1a0] sm:$0xff]
    %v235 = vld [vmem:[#allocation5 + $0x1a8] sm:$0xff]
    %v236 = vld [vmem:[#allocation5 + $0x1b0] sm:$0xff]
    %v237 = vld [vmem:[#allocation5 + $0x1b8] sm:$0xff]
    %v238 = vld [vmem:[#allocation5 + $0x1c0] sm:$0xff]
    %v239 = vld [vmem:[#allocation5 + $0x1c8] sm:$0xff]
    %v240 = vld [vmem:[#allocation5 + $0x1d0] sm:$0xff]
    %v241 = vld [vmem:[#allocation5 + $0x1d8] sm:$0xff]
    %v242 = vld [vmem:[#allocation5 + $0x1e0] sm:$0xff]
    %v243 = vld [vmem:[#allocation5 + $0x1e8] sm:$0xff]
    %v244 = vld [vmem:[#allocation5 + $0x1f0] sm:$0xff]
    %v245 = vld [vmem:[#allocation5 + $0x1f8] sm:$0xff]
    %v246 = vld [vmem:[%s2] sm:$0xf]
    %v248 = vlaneseq
    %v249 = vshrl.u32 %v248, 7
    %v250 = vsub.s32 0, %v249
    %v251 = vrot.slane %v246, %v250
    %v252 = vlaneseq
    %v253 = vshrl.u32 %v252, 7
    %v254 = vsub.s32 1, %v253
    %v255 = vrot.slane %v246, %v254
    %v256 = vlaneseq
    %v257 = vshrl.u32 %v256, 7
    %v258 = vsub.s32 2, %v257
    %v259 = vrot.slane %v246, %v258
    %v260 = vlaneseq
    %v261 = vshrl.u32 %v260, 7
    %v262 = vsub.s32 3, %v261
    %v263 = vrot.slane %v246, %v262
    %v276 = vunpack.c.l.b16 %v174
    %v277 = vunpack.c.h.b16 %v174
    %v278 = vunpack.c.l.b16 %v175
    %v279 = vunpack.c.h.b16 %v175
    %v280 = vunpack.c.l.b16 %v176
    %v281 = vunpack.c.h.b16 %v176
    %v282 = vunpack.c.l.b16 %v177
    %v283 = vunpack.c.h.b16 %v177
    %v284 = vunpack.c.l.b16 %v178
    %v285 = vunpack.c.h.b16 %v178
    %v286 = vunpack.c.l.b16 %v179
    %v287 = vunpack.c.h.b16 %v179
    %v288 = vunpack.c.l.b16 %v180
    %v289 = vunpack.c.h.b16 %v180
    %v290 = vunpack.c.l.b16 %v181
    %v291 = vunpack.c.h.b16 %v181
    %v292 = vpack.c.b16 %v278, %v276
    %v293 = vpack.c.b16 %v279, %v277
    %v294 = vpack.c.b16 %v282, %v280
    %v295 = vpack.c.b16 %v283, %v281
    %v296 = vpack.c.b16 %v286, %v284
    %v297 = vpack.c.b16 %v287, %v285
    %v298 = vpack.c.b16 %v290, %v288
    %v299 = vpack.c.b16 %v291, %v289
    %v372 = vunpack.c.l.b16 %v182
    %v373 = vunpack.c.h.b16 %v182
    %v374 = vunpack.c.l.b16 %v183
    %v375 = vunpack.c.h.b16 %v183
    %v376 = vunpack.c.l.b16 %v184
    %v377 = vunpack.c.h.b16 %v184
    %v378 = vunpack.c.l.b16 %v185
    %v379 = vunpack.c.h.b16 %v185
    %v380 = vunpack.c.l.b16 %v186
    %v381 = vunpack.c.h.b16 %v186
    %v382 = vunpack.c.l.b16 %v187
    %v383 = vunpack.c.h.b16 %v187
    %v384 = vunpack.c.l.b16 %v188
    %v385 = vunpack.c.h.b16 %v188
    %v386 = vunpack.c.l.b16 %v189
    %v387 = vunpack.c.h.b16 %v189
    %v388 = vunpack.c.l.b16 %v190
    %v389 = vunpack.c.h.b16 %v190
    %v390 = vunpack.c.l.b16 %v191
    %v391 = vunpack.c.h.b16 %v191
    %v392 = vunpack.c.l.b16 %v192
    %v393 = vunpack.c.h.b16 %v192
    %v394 = vunpack.c.l.b16 %v193
    %v395 = vunpack.c.h.b16 %v193
    %v396 = vunpack.c.l.b16 %v194
    %v397 = vunpack.c.h.b16 %v194
    %v398 = vunpack.c.l.b16 %v195
    %v399 = vunpack.c.h.b16 %v195
    %v400 = vunpack.c.l.b16 %v196
    %v401 = vunpack.c.h.b16 %v196
    %v402 = vunpack.c.l.b16 %v197
    %v403 = vunpack.c.h.b16 %v197
    %v404 = vunpack.c.l.b16 %v198
    %v405 = vunpack.c.h.b16 %v198
    %v406 = vunpack.c.l.b16 %v199
    %v407 = vunpack.c.h.b16 %v199
    %v408 = vunpack.c.l.b16 %v200
    %v409 = vunpack.c.h.b16 %v200
    %v410 = vunpack.c.l.b16 %v201
    %v411 = vunpack.c.h.b16 %v201
    %v412 = vunpack.c.l.b16 %v202
    %v413 = vunpack.c.h.b16 %v202
    %v414 = vunpack.c.l.b16 %v203
    %v415 = vunpack.c.h.b16 %v203
    %v416 = vunpack.c.l.b16 %v204
    %v417 = vunpack.c.h.b16 %v204
    %v418 = vunpack.c.l.b16 %v205
    %v419 = vunpack.c.h.b16 %v205
    %v420 = vunpack.c.l.b16 %v206
    %v421 = vunpack.c.h.b16 %v206
    %v422 = vunpack.c.l.b16 %v207
    %v423 = vunpack.c.h.b16 %v207
    %v424 = vunpack.c.l.b16 %v208
    %v425 = vunpack.c.h.b16 %v208
    %v426 = vunpack.c.l.b16 %v209
    %v427 = vunpack.c.h.b16 %v209
    %v428 = vunpack.c.l.b16 %v210
    %v429 = vunpack.c.h.b16 %v210
    %v430 = vunpack.c.l.b16 %v211
    %v431 = vunpack.c.h.b16 %v211
    %v432 = vunpack.c.l.b16 %v212
    %v433 = vunpack.c.h.b16 %v212
    %v434 = vunpack.c.l.b16 %v213
    %v435 = vunpack.c.h.b16 %v213
    %v436 = vunpack.c.l.b16 %v214
    %v437 = vunpack.c.h.b16 %v214
    %v438 = vunpack.c.l.b16 %v215
    %v439 = vunpack.c.h.b16 %v215
    %v440 = vunpack.c.l.b16 %v216
    %v441 = vunpack.c.h.b16 %v216
    %v442 = vunpack.c.l.b16 %v217
    %v443 = vunpack.c.h.b16 %v217
    %v444 = vunpack.c.l.b16 %v218
    %v445 = vunpack.c.h.b16 %v218
    %v446 = vunpack.c.l.b16 %v219
    %v447 = vunpack.c.h.b16 %v219
    %v448 = vunpack.c.l.b16 %v220
    %v449 = vunpack.c.h.b16 %v220
    %v450 = vunpack.c.l.b16 %v221
    %v451 = vunpack.c.h.b16 %v221
    %v452 = vunpack.c.l.b16 %v222
    %v453 = vunpack.c.h.b16 %v222
    %v454 = vunpack.c.l.b16 %v223
    %v455 = vunpack.c.h.b16 %v223
    %v456 = vunpack.c.l.b16 %v224
    %v457 = vunpack.c.h.b16 %v224
    %v458 = vunpack.c.l.b16 %v225
    %v459 = vunpack.c.h.b16 %v225
    %v460 = vunpack.c.l.b16 %v226
    %v461 = vunpack.c.h.b16 %v226
    %v462 = vunpack.c.l.b16 %v227
    %v463 = vunpack.c.h.b16 %v227
    %v464 = vunpack.c.l.b16 %v228
    %v465 = vunpack.c.h.b16 %v228
    %v466 = vunpack.c.l.b16 %v229
    %v467 = vunpack.c.h.b16 %v229
    %v468 = vunpack.c.l.b16 %v230
    %v469 = vunpack.c.h.b16 %v230
    %v470 = vunpack.c.l.b16 %v231
    %v471 = vunpack.c.h.b16 %v231
    %v472 = vunpack.c.l.b16 %v232
    %v473 = vunpack.c.h.b16 %v232
    %v474 = vunpack.c.l.b16 %v233
    %v475 = vunpack.c.h.b16 %v233
    %v476 = vunpack.c.l.b16 %v234
    %v477 = vunpack.c.h.b16 %v234
    %v478 = vunpack.c.l.b16 %v235
    %v479 = vunpack.c.h.b16 %v235
    %v480 = vunpack.c.l.b16 %v236
    %v481 = vunpack.c.h.b16 %v236
    %v482 = vunpack.c.l.b16 %v237
    %v483 = vunpack.c.h.b16 %v237
    %v484 = vunpack.c.l.b16 %v238
    %v485 = vunpack.c.h.b16 %v238
    %v486 = vunpack.c.l.b16 %v239
    %v487 = vunpack.c.h.b16 %v239
    %v488 = vunpack.c.l.b16 %v240
    %v489 = vunpack.c.h.b16 %v240
    %v490 = vunpack.c.l.b16 %v241
    %v491 = vunpack.c.h.b16 %v241
    %v492 = vunpack.c.l.b16 %v242
    %v493 = vunpack.c.h.b16 %v242
    %v494 = vunpack.c.l.b16 %v243
    %v495 = vunpack.c.h.b16 %v243
    %v496 = vunpack.c.l.b16 %v244
    %v497 = vunpack.c.h.b16 %v244
    %v498 = vunpack.c.l.b16 %v245
    %v499 = vunpack.c.h.b16 %v245
    %v500 = vpack.c.b16 %v376, %v372
    %v501 = vpack.c.b16 %v377, %v373
    %v502 = vpack.c.b16 %v378, %v374
    %v503 = vpack.c.b16 %v379, %v375
    %v504 = vpack.c.b16 %v384, %v380
    %v505 = vpack.c.b16 %v385, %v381
    %v506 = vpack.c.b16 %v386, %v382
    %v507 = vpack.c.b16 %v387, %v383
    %v508 = vpack.c.b16 %v392, %v388
    %v509 = vpack.c.b16 %v393, %v389
    %v510 = vpack.c.b16 %v394, %v390
    %v511 = vpack.c.b16 %v395, %v391
    %v512 = vpack.c.b16 %v400, %v396
    %v513 = vpack.c.b16 %v401, %v397
    %v514 = vpack.c.b16 %v402, %v398
    %v515 = vpack.c.b16 %v403, %v399
    %v516 = vpack.c.b16 %v408, %v404
    %v517 = vpack.c.b16 %v409, %v405
    %v518 = vpack.c.b16 %v410, %v406
    %v519 = vpack.c.b16 %v411, %v407
    %v520 = vpack.c.b16 %v416, %v412
    %v521 = vpack.c.b16 %v417, %v413
    %v522 = vpack.c.b16 %v418, %v414
    %v523 = vpack.c.b16 %v419, %v415
    %v524 = vpack.c.b16 %v424, %v420
    %v525 = vpack.c.b16 %v425, %v421
    %v526 = vpack.c.b16 %v426, %v422
    %v527 = vpack.c.b16 %v427, %v423
    %v528 = vpack.c.b16 %v432, %v428
    %v529 = vpack.c.b16 %v433, %v429
    %v530 = vpack.c.b16 %v434, %v430
    %v531 = vpack.c.b16 %v435, %v431
    %v532 = vpack.c.b16 %v440, %v436
    %v533 = vpack.c.b16 %v441, %v437
    %v534 = vpack.c.b16 %v442, %v438
    %v535 = vpack.c.b16 %v443, %v439
    %v536 = vpack.c.b16 %v448, %v444
    %v537 = vpack.c.b16 %v449, %v445
    %v538 = vpack.c.b16 %v450, %v446
    %v539 = vpack.c.b16 %v451, %v447
    %v540 = vpack.c.b16 %v456, %v452
    %v541 = vpack.c.b16 %v457, %v453
    %v542 = vpack.c.b16 %v458, %v454
    %v543 = vpack.c.b16 %v459, %v455
    %v544 = vpack.c.b16 %v464, %v460
    %v545 = vpack.c.b16 %v465, %v461
    %v546 = vpack.c.b16 %v466, %v462
    %v547 = vpack.c.b16 %v467, %v463
    %v548 = vpack.c.b16 %v472, %v468
    %v549 = vpack.c.b16 %v473, %v469
    %v550 = vpack.c.b16 %v474, %v470
    %v551 = vpack.c.b16 %v475, %v471
    %v552 = vpack.c.b16 %v480, %v476
    %v553 = vpack.c.b16 %v481, %v477
    %v554 = vpack.c.b16 %v482, %v478
    %v555 = vpack.c.b16 %v483, %v479
    %v556 = vpack.c.b16 %v488, %v484
    %v557 = vpack.c.b16 %v489, %v485
    %v558 = vpack.c.b16 %v490, %v486
    %v559 = vpack.c.b16 %v491, %v487
    %v560 = vpack.c.b16 %v496, %v492
    %v561 = vpack.c.b16 %v497, %v493
    %v562 = vpack.c.b16 %v498, %v494
    %v563 = vpack.c.b16 %v499, %v495
    %628 = vmatprep.subr.bf16.mxu0 %v501
    %629 = vmatpush1.bf16.msra.mxu0 %v500
    %630 = vmatprep.subr.bf16.mxu0 %v505
    %631 = vmatpush1.bf16.msra.mxu0 %v504
    %632 = vmatprep.subr.bf16.mxu0 %v509
    %633 = vmatpush1.bf16.msra.mxu0 %v508
    %634 = vmatprep.subr.bf16.mxu0 %v513
    %635 = vmatpush1.bf16.msra.mxu0 %v512
    %636 = vmatprep.subr.bf16.mxu0 %v517
    %637 = vmatpush1.bf16.msra.mxu0 %v516
    %638 = vmatprep.subr.bf16.mxu0 %v521
    %639 = vmatpush1.bf16.msra.mxu0 %v520
    %640 = vmatprep.subr.bf16.mxu0 %v525
    %641 = vmatpush1.bf16.msra.mxu0 %v524
    %642 = vmatprep.subr.bf16.mxu0 %v529
    %643 = vmatpush1.bf16.msra.mxu0 %v528
    %644 = vmatprep.subr.bf16.mxu0 %v533
    %645 = vmatpush1.bf16.msra.mxu0 %v532
    %646 = vmatprep.subr.bf16.mxu0 %v537
    %647 = vmatpush1.bf16.msra.mxu0 %v536
    %648 = vmatprep.subr.bf16.mxu0 %v541
    %649 = vmatpush1.bf16.msra.mxu0 %v540
    %650 = vmatprep.subr.bf16.mxu0 %v545
    %651 = vmatpush1.bf16.msra.mxu0 %v544
    %652 = vmatprep.subr.bf16.mxu0 %v549
    %653 = vmatpush1.bf16.msra.mxu0 %v548
    %654 = vmatprep.subr.bf16.mxu0 %v553
    %655 = vmatpush1.bf16.msra.mxu0 %v552
    %656 = vmatprep.subr.bf16.mxu0 %v557
    %657 = vmatpush1.bf16.msra.mxu0 %v556
    %658 = vmatprep.subr.bf16.mxu0 %v561
    %659 = vmatpush1.bf16.msra.mxu0 %v560
    %660 = vmatprep.mubr.bf16.mxu0 %v293
    %661 = vmatmul.mubr.bf16.gmra.mrb[0].mxu0 %v292
    %v662 = vpop.f32.mrb[0].mxu0
    %v663 = vadd.f32 %v251, %v662
    %v664 = vpop.f32.mrb[0].mxu0
    %v665 = vadd.f32 %v255, %v664
    %v666 = vpop.f32.mrb[0].mxu0
    %v667 = vadd.f32 %v251, %v666
    %v668 = vpop.f32.mrb[0].mxu0
    %v669 = vadd.f32 %v255, %v668
    %670 = vmatprep.mubr.bf16.mxu0 %v295
    %671 = vmatmul.mubr.bf16.gmra.mrb[0].mxu0 %v294
    %v672 = vpop.f32.mrb[0].mxu0
    %v673 = vadd.f32 %v251, %v672
    %v674 = vpop.f32.mrb[0].mxu0
    %v675 = vadd.f32 %v255, %v674
    %v676 = vpop.f32.mrb[0].mxu0
    %v677 = vadd.f32 %v251, %v676
    %v678 = vpop.f32.mrb[0].mxu0
    %v679 = vadd.f32 %v255, %v678
    %680 = vmatprep.mubr.bf16.mxu0 %v297
    %681 = vmatmul.mubr.bf16.gmra.mrb[0].mxu0 %v296
    %v682 = vpop.f32.mrb[0].mxu0
    %v683 = vadd.f32 %v251, %v682
    %v684 = vpop.f32.mrb[0].mxu0
    %v685 = vadd.f32 %v255, %v684
    %v686 = vpop.f32.mrb[0].mxu0
    %v687 = vadd.f32 %v251, %v686
    %v688 = vpop.f32.mrb[0].mxu0
    %v689 = vadd.f32 %v255, %v688
    %690 = vmatprep.mubr.bf16.mxu0 %v299
    %691 = vmatmul.mubr.bf16.gmra.mrb[0].mxu0 %v298
    %v692 = vpop.f32.mrb[0].mxu0
    %v693 = vadd.f32 %v251, %v692
    %v694 = vpop.f32.mrb[0].mxu0
    %v695 = vadd.f32 %v255, %v694
    %v696 = vpop.f32.mrb[0].mxu0
    %v697 = vadd.f32 %v251, %v696
    %v698 = vpop.f32.mrb[0].mxu0
    %v699 = vadd.f32 %v255, %v698
    %700 = vdwg.mxu0
    %701 = vmatprep.subr.bf16.mxu0 %v503
    %702 = vmatpush1.bf16.msra.mxu0 %v502
    %703 = vmatprep.subr.bf16.mxu0 %v507
    %704 = vmatpush1.bf16.msra.mxu0 %v506
    %705 = vmatprep.subr.bf16.mxu0 %v511
    %706 = vmatpush1.bf16.msra.mxu0 %v510
    %707 = vmatprep.subr.bf16.mxu0 %v515
    %708 = vmatpush1.bf16.msra.mxu0 %v514
    %709 = vmatprep.subr.bf16.mxu0 %v519
    %710 = vmatpush1.bf16.msra.mxu0 %v518
    %711 = vmatprep.subr.bf16.mxu0 %v523
    %712 = vmatpush1.bf16.msra.mxu0 %v522
    %713 = vmatprep.subr.bf16.mxu0 %v527
    %714 = vmatpush1.bf16.msra.mxu0 %v526
    %715 = vmatprep.subr.bf16.mxu0 %v531
    %716 = vmatpush1.bf16.msra.mxu0 %v530
    %717 = vmatprep.subr.bf16.mxu0 %v535
    %718 = vmatpush1.bf16.msra.mxu0 %v534
    %719 = vmatprep.subr.bf16.mxu0 %v539
    %720 = vmatpush1.bf16.msra.mxu0 %v538
    %721 = vmatprep.subr.bf16.mxu0 %v543
    %722 = vmatpush1.bf16.msra.mxu0 %v542
    %723 = vmatprep.subr.bf16.mxu0 %v547
    %724 = vmatpush1.bf16.msra.mxu0 %v546
    %725 = vmatprep.subr.bf16.mxu0 %v551
    %726 = vmatpush1.bf16.msra.mxu0 %v550
    %727 = vmatprep.subr.bf16.mxu0 %v555
    %728 = vmatpush1.bf16.msra.mxu0 %v554
    %729 = vmatprep.subr.bf16.mxu0 %v559
    %730 = vmatpush1.bf16.msra.mxu0 %v558
    %731 = vmatprep.subr.bf16.mxu0 %v563
    %732 = vmatpush1.bf16.msra.mxu0 %v562
    %733 = vmatprep.mubr.bf16.mxu0 %v293
    %734 = vmatmul.mubr.bf16.gmra.mrb[0].mxu0 %v292
    %v735 = vpop.f32.mrb[0].mxu0
    %v736 = vadd.f32 %v259, %v735
    %v737 = vpop.f32.mrb[0].mxu0
    %v738 = vadd.f32 %v263, %v737
    %v739 = vpop.f32.mrb[0].mxu0
    %v740 = vadd.f32 %v259, %v739
    %v741 = vpop.f32.mrb[0].mxu0
    %v742 = vadd.f32 %v263, %v741
    %743 = vmatprep.mubr.bf16.mxu0 %v295
    %744 = vmatmul.mubr.bf16.gmra.mrb[0].mxu0 %v294
    %v745 = vpop.f32.mrb[0].mxu0
    %v746 = vadd.f32 %v259, %v745
    %v747 = vpop.f32.mrb[0].mxu0
    %v748 = vadd.f32 %v263, %v747
    %v749 = vpop.f32.mrb[0].mxu0
    %v750 = vadd.f32 %v259, %v749
    %v751 = vpop.f32.mrb[0].mxu0
    %v752 = vadd.f32 %v263, %v751
    %753 = vmatprep.mubr.bf16.mxu0 %v297
    %754 = vmatmul.mubr.bf16.gmra.mrb[0].mxu0 %v296
    %v755 = vpop.f32.mrb[0].mxu0
    %v756 = vadd.f32 %v259, %v755
    %v757 = vpop.f32.mrb[0].mxu0
    %v758 = vadd.f32 %v263, %v757
    %v759 = vpop.f32.mrb[0].mxu0
    %v760 = vadd.f32 %v259, %v759
    %v761 = vpop.f32.mrb[0].mxu0
    %v762 = vadd.f32 %v263, %v761
    %763 = vmatprep.mubr.bf16.mxu0 %v299
    %764 = vmatmul.mubr.bf16.gmra.mrb[0].mxu0 %v298
    %v765 = vpop.f32.mrb[0].mxu0
    %v766 = vadd.f32 %v259, %v765
    %v767 = vpop.f32.mrb[0].mxu0
    %v768 = vadd.f32 %v263, %v767
    %v769 = vpop.f32.mrb[0].mxu0
    %v770 = vadd.f32 %v259, %v769
    %v771 = vpop.f32.mrb[0].mxu0
    %v772 = vadd.f32 %v263, %v771
    %773 = vdwg.mxu0
    %v774 = vtanh.pop %v663
    %v775 = vtanh.pop %v665
    %v776 = vtanh.pop %v736
    %v777 = vtanh.pop %v738
    %s778 = smul.u32 4, 64
    %s779 = smul.u32 %s778, 4
    %s780 = sshll.u32 %s779, 4
    %781 = dma.done [#allocation4], %s780
    %v782 = vpack.c.bf16 %v774, %v774
    %v783 = vpack.c.bf16 %v775, %v775
    %v784 = vpack.c.bf16 %v776, %v776
    %v785 = vpack.c.bf16 %v777, %v777
    %v786 = vld [vmem:[#allocation2] sm:$0xff]
    %v787 = vld [vmem:[#allocation2 + $0x8] sm:$0xff]
    %v788 = vld [vmem:[#allocation2 + $0x10] sm:$0xff]
    %v789 = vld [vmem:[#allocation2 + $0x18] sm:$0xff]
    %v790 = vld [vmem:[#allocation2 + $0x20] sm:$0xff]
    %v791 = vld [vmem:[#allocation2 + $0x28] sm:$0xff]
    %v792 = vld [vmem:[#allocation2 + $0x30] sm:$0xff]
    %v793 = vld [vmem:[#allocation2 + $0x38] sm:$0xff]
    %v794 = vld [vmem:[#allocation2 + $0x40] sm:$0xff]
    %v795 = vld [vmem:[#allocation2 + $0x48] sm:$0xff]
    %v796 = vld [vmem:[#allocation2 + $0x50] sm:$0xff]
    %v797 = vld [vmem:[#allocation2 + $0x58] sm:$0xff]
    %v798 = vld [vmem:[#allocation2 + $0x60] sm:$0xff]
    %v799 = vld [vmem:[#allocation2 + $0x68] sm:$0xff]
    %v800 = vld [vmem:[#allocation2 + $0x70] sm:$0xff]
    %v801 = vld [vmem:[#allocation2 + $0x78] sm:$0xff]
    %v802 = vld [vmem:[#allocation2 + $0x80] sm:$0xff]
    %v803 = vld [vmem:[#allocation2 + $0x88] sm:$0xff]
    %v804 = vld [vmem:[#allocation2 + $0x90] sm:$0xff]
    %v805 = vld [vmem:[#allocation2 + $0x98] sm:$0xff]
    %v806 = vld [vmem:[#allocation2 + $0xa0] sm:$0xff]
    %v807 = vld [vmem:[#allocation2 + $0xa8] sm:$0xff]
    %v808 = vld [vmem:[#allocation2 + $0xb0] sm:$0xff]
    %v809 = vld [vmem:[#allocation2 + $0xb8] sm:$0xff]
    %v810 = vld [vmem:[#allocation2 + $0xc0] sm:$0xff]
    %v811 = vld [vmem:[#allocation2 + $0xc8] sm:$0xff]
    %v812 = vld [vmem:[#allocation2 + $0xd0] sm:$0xff]
    %v813 = vld [vmem:[#allocation2 + $0xd8] sm:$0xff]
    %v814 = vld [vmem:[#allocation2 + $0xe0] sm:$0xff]
    %v815 = vld [vmem:[#allocation2 + $0xe8] sm:$0xff]
    %v816 = vld [vmem:[#allocation2 + $0xf0] sm:$0xff]
    %v817 = vld [vmem:[#allocation2 + $0xf8] sm:$0xff]
    %v818 = vld [vmem:[#allocation2 + $0x100] sm:$0xff]
    %v819 = vld [vmem:[#allocation2 + $0x108] sm:$0xff]
    %v820 = vld [vmem:[#allocation2 + $0x110] sm:$0xff]
    %v821 = vld [vmem:[#allocation2 + $0x118] sm:$0xff]
    %v822 = vld [vmem:[#allocation2 + $0x120] sm:$0xff]
    %v823 = vld [vmem:[#allocation2 + $0x128] sm:$0xff]
    %v824 = vld [vmem:[#allocation2 + $0x130] sm:$0xff]
    %v825 = vld [vmem:[#allocation2 + $0x138] sm:$0xff]
    %v826 = vld [vmem:[#allocation2 + $0x140] sm:$0xff]
    %v827 = vld [vmem:[#allocation2 + $0x148] sm:$0xff]
    %v828 = vld [vmem:[#allocation2 + $0x150] sm:$0xff]
    %v829 = vld [vmem:[#allocation2 + $0x158] sm:$0xff]
    %v830 = vld [vmem:[#allocation2 + $0x160] sm:$0xff]
    %v831 = vld [vmem:[#allocation2 + $0x168] sm:$0xff]
    %v832 = vld [vmem:[#allocation2 + $0x170] sm:$0xff]
    %v833 = vld [vmem:[#allocation2 + $0x178] sm:$0xff]
    %v834 = vld [vmem:[#allocation2 + $0x180] sm:$0xff]
    %v835 = vld [vmem:[#allocation2 + $0x188] sm:$0xff]
    %v836 = vld [vmem:[#allocation2 + $0x190] sm:$0xff]
    %v837 = vld [vmem:[#allocation2 + $0x198] sm:$0xff]
    %v838 = vld [vmem:[#allocation2 + $0x1a0] sm:$0xff]
    %v839 = vld [vmem:[#allocation2 + $0x1a8] sm:$0xff]
    %v840 = vld [vmem:[#allocation2 + $0x1b0] sm:$0xff]
    %v841 = vld [vmem:[#allocation2 + $0x1b8] sm:$0xff]
    %v842 = vld [vmem:[#allocation2 + $0x1c0] sm:$0xff]
    %v843 = vld [vmem:[#allocation2 + $0x1c8] sm:$0xff]
    %v844 = vld [vmem:[#allocation2 + $0x1d0] sm:$0xff]
    %v845 = vld [vmem:[#allocation2 + $0x1d8] sm:$0xff]
    %v846 = vld [vmem:[#allocation2 + $0x1e0] sm:$0xff]
    %v847 = vld [vmem:[#allocation2 + $0x1e8] sm:$0xff]
    %v848 = vld [vmem:[#allocation2 + $0x1f0] sm:$0xff]
    %v849 = vld [vmem:[#allocation2 + $0x1f8] sm:$0xff]
    %v850 = vld [vmem:[#allocation2 + $0x200] sm:$0xff]
    %v851 = vld [vmem:[#allocation2 + $0x208] sm:$0xff]
    %v852 = vld [vmem:[#allocation2 + $0x210] sm:$0xff]
    %v853 = vld [vmem:[#allocation2 + $0x218] sm:$0xff]
    %v854 = vld [vmem:[#allocation2 + $0x220] sm:$0xff]
    %v855 = vld [vmem:[#allocation2 + $0x228] sm:$0xff]
    %v856 = vld [vmem:[#allocation2 + $0x230] sm:$0xff]
    %v857 = vld [vmem:[#allocation2 + $0x238] sm:$0xff]
    %v858 = vld [vmem:[#allocation2 + $0x240] sm:$0xff]
    %v859 = vld [vmem:[#allocation2 + $0x248] sm:$0xff]
    %v860 = vld [vmem:[#allocation2 + $0x250] sm:$0xff]
    %v861 = vld [vmem:[#allocation2 + $0x258] sm:$0xff]
    %v862 = vld [vmem:[#allocation2 + $0x260] sm:$0xff]
    %v863 = vld [vmem:[#allocation2 + $0x268] sm:$0xff]
    %v864 = vld [vmem:[#allocation2 + $0x270] sm:$0xff]
    %v865 = vld [vmem:[#allocation2 + $0x278] sm:$0xff]
    %v866 = vld [vmem:[#allocation2 + $0x280] sm:$0xff]
    %v867 = vld [vmem:[#allocation2 + $0x288] sm:$0xff]
    %v868 = vld [vmem:[#allocation2 + $0x290] sm:$0xff]
    %v869 = vld [vmem:[#allocation2 + $0x298] sm:$0xff]
    %v870 = vld [vmem:[#allocation2 + $0x2a0] sm:$0xff]
    %v871 = vld [vmem:[#allocation2 + $0x2a8] sm:$0xff]
    %v872 = vld [vmem:[#allocation2 + $0x2b0] sm:$0xff]
    %v873 = vld [vmem:[#allocation2 + $0x2b8] sm:$0xff]
    %v874 = vld [vmem:[#allocation2 + $0x2c0] sm:$0xff]
    %v875 = vld [vmem:[#allocation2 + $0x2c8] sm:$0xff]
    %v876 = vld [vmem:[#allocation2 + $0x2d0] sm:$0xff]
    %v877 = vld [vmem:[#allocation2 + $0x2d8] sm:$0xff]
    %v878 = vld [vmem:[#allocation2 + $0x2e0] sm:$0xff]
    %v879 = vld [vmem:[#allocation2 + $0x2e8] sm:$0xff]
    %v880 = vld [vmem:[#allocation2 + $0x2f0] sm:$0xff]
    %v881 = vld [vmem:[#allocation2 + $0x2f8] sm:$0xff]
    %v882 = vld [vmem:[#allocation2 + $0x300] sm:$0xff]
    %v883 = vld [vmem:[#allocation2 + $0x308] sm:$0xff]
    %v884 = vld [vmem:[#allocation2 + $0x310] sm:$0xff]
    %v885 = vld [vmem:[#allocation2 + $0x318] sm:$0xff]
    %v886 = vld [vmem:[#allocation2 + $0x320] sm:$0xff]
    %v887 = vld [vmem:[#allocation2 + $0x328] sm:$0xff]
    %v888 = vld [vmem:[#allocation2 + $0x330] sm:$0xff]
    %v889 = vld [vmem:[#allocation2 + $0x338] sm:$0xff]
    %v890 = vld [vmem:[#allocation2 + $0x340] sm:$0xff]
    %v891 = vld [vmem:[#allocation2 + $0x348] sm:$0xff]
    %v892 = vld [vmem:[#allocation2 + $0x350] sm:$0xff]
    %v893 = vld [vmem:[#allocation2 + $0x358] sm:$0xff]
    %v894 = vld [vmem:[#allocation2 + $0x360] sm:$0xff]
    %v895 = vld [vmem:[#allocation2 + $0x368] sm:$0xff]
    %v896 = vld [vmem:[#allocation2 + $0x370] sm:$0xff]
    %v897 = vld [vmem:[#allocation2 + $0x378] sm:$0xff]
    %v898 = vld [vmem:[#allocation2 + $0x380] sm:$0xff]
    %v899 = vld [vmem:[#allocation2 + $0x388] sm:$0xff]
    %v900 = vld [vmem:[#allocation2 + $0x390] sm:$0xff]
    %v901 = vld [vmem:[#allocation2 + $0x398] sm:$0xff]
    %v902 = vld [vmem:[#allocation2 + $0x3a0] sm:$0xff]
    %v903 = vld [vmem:[#allocation2 + $0x3a8] sm:$0xff]
    %v904 = vld [vmem:[#allocation2 + $0x3b0] sm:$0xff]
    %v905 = vld [vmem:[#allocation2 + $0x3b8] sm:$0xff]
    %v906 = vld [vmem:[#allocation2 + $0x3c0] sm:$0xff]
    %v907 = vld [vmem:[#allocation2 + $0x3c8] sm:$0xff]
    %v908 = vld [vmem:[#allocation2 + $0x3d0] sm:$0xff]
    %v909 = vld [vmem:[#allocation2 + $0x3d8] sm:$0xff]
    %v910 = vld [vmem:[#allocation2 + $0x3e0] sm:$0xff]
    %v911 = vld [vmem:[#allocation2 + $0x3e8] sm:$0xff]
    %v912 = vld [vmem:[#allocation2 + $0x3f0] sm:$0xff]
    %v913 = vld [vmem:[#allocation2 + $0x3f8] sm:$0xff]
    %914 = vmatprep.subr.bf16.mxu0 %v787
    %915 = vmatpush1.bf16.msra.mxu0 %v786
    %916 = vmatprep.subr.bf16.mxu0 %v791
    %917 = vmatpush1.bf16.msra.mxu0 %v790
    %918 = vmatprep.subr.bf16.mxu0 %v795
    %919 = vmatpush1.bf16.msra.mxu0 %v794
    %920 = vmatprep.subr.bf16.mxu0 %v799
    %921 = vmatpush1.bf16.msra.mxu0 %v798
    %922 = vmatprep.subr.bf16.mxu0 %v803
    %923 = vmatpush1.bf16.msra.mxu0 %v802
    %924 = vmatprep.subr.bf16.mxu0 %v807
    %925 = vmatpush1.bf16.msra.mxu0 %v806
    %926 = vmatprep.subr.bf16.mxu0 %v811
    %927 = vmatpush1.bf16.msra.mxu0 %v810
    %928 = vmatprep.subr.bf16.mxu0 %v815
    %929 = vmatpush1.bf16.msra.mxu0 %v814
    %930 = vmatprep.subr.bf16.mxu0 %v819
    %931 = vmatpush1.bf16.msra.mxu0 %v818
    %932 = vmatprep.subr.bf16.mxu0 %v823
    %933 = vmatpush1.bf16.msra.mxu0 %v822
    %934 = vmatprep.subr.bf16.mxu0 %v827
    %935 = vmatpush1.bf16.msra.mxu0 %v826
    %936 = vmatprep.subr.bf16.mxu0 %v831
    %937 = vmatpush1.bf16.msra.mxu0 %v830
    %938 = vmatprep.subr.bf16.mxu0 %v835
    %939 = vmatpush1.bf16.msra.mxu0 %v834
    %940 = vmatprep.subr.bf16.mxu0 %v839
    %941 = vmatpush1.bf16.msra.mxu0 %v838
    %942 = vmatprep.subr.bf16.mxu0 %v843
    %943 = vmatpush1.bf16.msra.mxu0 %v842
    %944 = vmatprep.subr.bf16.mxu0 %v847
    %945 = vmatpush1.bf16.msra.mxu0 %v846
    %946 = vmatprep.mubr.bf16.mxu0 %v783
    %947 = vmatmul.mubr.bf16.gmra.mrb[0].mxu0 %v782
    %v948 = vpop.f32.mrb[0].mxu0
    %v949 = vadd.f32 0.0, %v948
    %v950 = vpop.f32.mrb[0].mxu0
    %v951 = vadd.f32 0.0, %v950
    %v952 = vpop.f32.mrb[0].mxu0
    %v953 = vpop.f32.mrb[0].mxu0
    %954 = vdwg.mxu0
    %955 = vmatprep.subr.bf16.mxu0 %v851
    %956 = vmatpush1.bf16.msra.mxu0 %v850
    %957 = vmatprep.subr.bf16.mxu0 %v855
    %958 = vmatpush1.bf16.msra.mxu0 %v854
    %959 = vmatprep.subr.bf16.mxu0 %v859
    %960 = vmatpush1.bf16.msra.mxu0 %v858
    %961 = vmatprep.subr.bf16.mxu0 %v863
    %962 = vmatpush1.bf16.msra.mxu0 %v862
    %963 = vmatprep.subr.bf16.mxu0 %v867
    %964 = vmatpush1.bf16.msra.mxu0 %v866
    %965 = vmatprep.subr.bf16.mxu0 %v871
    %966 = vmatpush1.bf16.msra.mxu0 %v870
    %967 = vmatprep.subr.bf16.mxu0 %v875
    %968 = vmatpush1.bf16.msra.mxu0 %v874
    %969 = vmatprep.subr.bf16.mxu0 %v879
    %970 = vmatpush1.bf16.msra.mxu0 %v878
    %971 = vmatprep.subr.bf16.mxu0 %v883
    %972 = vmatpush1.bf16.msra.mxu0 %v882
    %973 = vmatprep.subr.bf16.mxu0 %v887
    %974 = vmatpush1.bf16.msra.mxu0 %v886
    %975 = vmatprep.subr.bf16.mxu0 %v891
    %976 = vmatpush1.bf16.msra.mxu0 %v890
    %977 = vmatprep.subr.bf16.mxu0 %v895
    %978 = vmatpush1.bf16.msra.mxu0 %v894
    %979 = vmatprep.subr.bf16.mxu0 %v899
    %980 = vmatpush1.bf16.msra.mxu0 %v898
    %981 = vmatprep.subr.bf16.mxu0 %v903
    %982 = vmatpush1.bf16.msra.mxu0 %v902
    %983 = vmatprep.subr.bf16.mxu0 %v907
    %984 = vmatpush1.bf16.msra.mxu0 %v906
    %985 = vmatprep.subr.bf16.mxu0 %v911
    %986 = vmatpush1.bf16.msra.mxu0 %v910
    %987 = vmatprep.mubr.bf16.mxu0 %v785
    %988 = vmatmul.mubr.bf16.gmra.mrb[0].mxu0 %v784
    %v989 = vpop.f32.mrb[0].mxu0
    %v990 = vadd.f32 %v949, %v989
    %v991 = vpop.f32.mrb[0].mxu0
    %v992 = vadd.f32 %v951, %v991
    %v993 = vpop.f32.mrb[0].mxu0
    %v994 = vpop.f32.mrb[0].mxu0
    %995 = vdwg.mxu0
    %996 = vmatprep.subr.bf16.mxu0 %v789
    %997 = vmatpush1.bf16.msra.mxu0 %v788
    %998 = vmatprep.subr.bf16.mxu0 %v793
    %999 = vmatpush1.bf16.msra.mxu0 %v792
    %1000 = vmatprep.subr.bf16.mxu0 %v797
    %1001 = vmatpush1.bf16.msra.mxu0 %v796
    %1002 = vmatprep.subr.bf16.mxu0 %v801
    %1003 = vmatpush1.bf16.msra.mxu0 %v800
    %1004 = vmatprep.subr.bf16.mxu0 %v805
    %1005 = vmatpush1.bf16.msra.mxu0 %v804
    %1006 = vmatprep.subr.bf16.mxu0 %v809
    %1007 = vmatpush1.bf16.msra.mxu0 %v808
    %1008 = vmatprep.subr.bf16.mxu0 %v813
    %1009 = vmatpush1.bf16.msra.mxu0 %v812
    %1010 = vmatprep.subr.bf16.mxu0 %v817
    %1011 = vmatpush1.bf16.msra.mxu0 %v816
    %1012 = vmatprep.subr.bf16.mxu0 %v821
    %1013 = vmatpush1.bf16.msra.mxu0 %v820
    %1014 = vmatprep.subr.bf16.mxu0 %v825
    %1015 = vmatpush1.bf16.msra.mxu0 %v824
    %1016 = vmatprep.subr.bf16.mxu0 %v829
    %1017 = vmatpush1.bf16.msra.mxu0 %v828
    %1018 = vmatprep.subr.bf16.mxu0 %v833
    %1019 = vmatpush1.bf16.msra.mxu0 %v832
    %1020 = vmatprep.subr.bf16.mxu0 %v837
    %1021 = vmatpush1.bf16.msra.mxu0 %v836
    %1022 = vmatprep.subr.bf16.mxu0 %v841
    %1023 = vmatpush1.bf16.msra.mxu0 %v840
    %1024 = vmatprep.subr.bf16.mxu0 %v845
    %1025 = vmatpush1.bf16.msra.mxu0 %v844
    %1026 = vmatprep.subr.bf16.mxu0 %v849
    %1027 = vmatpush1.bf16.msra.mxu0 %v848
    %1028 = vmatprep.mubr.bf16.mxu0 %v783
    %1029 = vmatmul.mubr.bf16.gmra.mrb[0].mxu0 %v782
    %v1030 = vpop.f32.mrb[0].mxu0
    %v1031 = vadd.f32 0.0, %v1030
    %v1032 = vpop.f32.mrb[0].mxu0
    %v1033 = vadd.f32 0.0, %v1032
    %v1034 = vpop.f32.mrb[0].mxu0
    %v1035 = vpop.f32.mrb[0].mxu0
    %1036 = vdwg.mxu0
    %1037 = vmatprep.subr.bf16.mxu0 %v853
    %1038 = vmatpush1.bf16.msra.mxu0 %v852
    %1039 = vmatprep.subr.bf16.mxu0 %v857
    %1040 = vmatpush1.bf16.msra.mxu0 %v856
    %1041 = vmatprep.subr.bf16.mxu0 %v861
    %1042 = vmatpush1.bf16.msra.mxu0 %v860
    %1043 = vmatprep.subr.bf16.mxu0 %v865
    %1044 = vmatpush1.bf16.msra.mxu0 %v864
    %1045 = vmatprep.subr.bf16.mxu0 %v869
    %1046 = vmatpush1.bf16.msra.mxu0 %v868
    %1047 = vmatprep.subr.bf16.mxu0 %v873
    %1048 = vmatpush1.bf16.msra.mxu0 %v872
    %1049 = vmatprep.subr.bf16.mxu0 %v877
    %1050 = vmatpush1.bf16.msra.mxu0 %v876
    %1051 = vmatprep.subr.bf16.mxu0 %v881
    %1052 = vmatpush1.bf16.msra.mxu0 %v880
    %1053 = vmatprep.subr.bf16.mxu0 %v885
    %1054 = vmatpush1.bf16.msra.mxu0 %v884
    %1055 = vmatprep.subr.bf16.mxu0 %v889
    %1056 = vmatpush1.bf16.msra.mxu0 %v888
    %1057 = vmatprep.subr.bf16.mxu0 %v893
    %1058 = vmatpush1.bf16.msra.mxu0 %v892
    %1059 = vmatprep.subr.bf16.mxu0 %v897
    %1060 = vmatpush1.bf16.msra.mxu0 %v896
    %1061 = vmatprep.subr.bf16.mxu0 %v901
    %1062 = vmatpush1.bf16.msra.mxu0 %v900
    %1063 = vmatprep.subr.bf16.mxu0 %v905
    %1064 = vmatpush1.bf16.msra.mxu0 %v904
    %1065 = vmatprep.subr.bf16.mxu0 %v909
    %1066 = vmatpush1.bf16.msra.mxu0 %v908
    %1067 = vmatprep.subr.bf16.mxu0 %v913
    %1068 = vmatpush1.bf16.msra.mxu0 %v912
    %1069 = vmatprep.mubr.bf16.mxu0 %v785
    %1070 = vmatmul.mubr.bf16.gmra.mrb[0].mxu0 %v784
    %v1071 = vpop.f32.mrb[0].mxu0
    %v1072 = vadd.f32 %v1031, %v1071
    %v1073 = vpop.f32.mrb[0].mxu0
    %v1074 = vadd.f32 %v1033, %v1073
    %v1075 = vpop.f32.mrb[0].mxu0
    %v1076 = vpop.f32.mrb[0].mxu0
    %1077 = vdwg.mxu0
    %v1078 = vadd.f32 %v667, %v990
    %v1079 = vadd.f32 %v669, %v992
    %v1080 = vadd.f32 %v740, %v1072
    %v1081 = vadd.f32 %v742, %v1074
    %v1082 = vtanh.pop %v1078
    %v1083 = vtanh.pop %v1079
    %v1084 = vtanh.pop %v1080
    %v1085 = vtanh.pop %v1081
    %v1086 = vpack.c.bf16 %v1082, %v1082
    %v1087 = vpack.c.bf16 %v1083, %v1083
    %v1088 = vpack.c.bf16 %v1084, %v1084
    %v1089 = vpack.c.bf16 %v1085, %v1085
    %1090 = vmatprep.subr.bf16.mxu0 %v787
    %1091 = vmatpush1.bf16.msra.mxu0 %v786
    %1092 = vmatprep.subr.bf16.mxu0 %v791
    %1093 = vmatpush1.bf16.msra.mxu0 %v790
    %1094 = vmatprep.subr.bf16.mxu0 %v795
    %1095 = vmatpush1.bf16.msra.mxu0 %v794
    %1096 = vmatprep.subr.bf16.mxu0 %v799
    %1097 = vmatpush1.bf16.msra.mxu0 %v798
    %1098 = vmatprep.subr.bf16.mxu0 %v803
    %1099 = vmatpush1.bf16.msra.mxu0 %v802
    %1100 = vmatprep.subr.bf16.mxu0 %v807
    %1101 = vmatpush1.bf16.msra.mxu0 %v806
    %1102 = vmatprep.subr.bf16.mxu0 %v811
    %1103 = vmatpush1.bf16.msra.mxu0 %v810
    %1104 = vmatprep.subr.bf16.mxu0 %v815
    %1105 = vmatpush1.bf16.msra.mxu0 %v814
    %1106 = vmatprep.subr.bf16.mxu0 %v819
    %1107 = vmatpush1.bf16.msra.mxu0 %v818
    %1108 = vmatprep.subr.bf16.mxu0 %v823
    %1109 = vmatpush1.bf16.msra.mxu0 %v822
    %1110 = vmatprep.subr.bf16.mxu0 %v827
    %1111 = vmatpush1.bf16.msra.mxu0 %v826
    %1112 = vmatprep.subr.bf16.mxu0 %v831
    %1113 = vmatpush1.bf16.msra.mxu0 %v830
    %1114 = vmatprep.subr.bf16.mxu0 %v835
    %1115 = vmatpush1.bf16.msra.mxu0 %v834
    %1116 = vmatprep.subr.bf16.mxu0 %v839
    %1117 = vmatpush1.bf16.msra.mxu0 %v838
    %1118 = vmatprep.subr.bf16.mxu0 %v843
    %1119 = vmatpush1.bf16.msra.mxu0 %v842
    %1120 = vmatprep.subr.bf16.mxu0 %v847
    %1121 = vmatpush1.bf16.msra.mxu0 %v846
    %1122 = vmatprep.mubr.bf16.mxu0 %v1087
    %1123 = vmatmul.mubr.bf16.gmra.mrb[0].mxu0 %v1086
    %v1124 = vpop.f32.mrb[0].mxu0
    %v1125 = vadd.f32 0.0, %v1124
    %v1126 = vpop.f32.mrb[0].mxu0
    %v1127 = vadd.f32 0.0, %v1126
    %v1128 = vpop.f32.mrb[0].mxu0
    %v1129 = vpop.f32.mrb[0].mxu0
    %1130 = vdwg.mxu0
    %1131 = vmatprep.subr.bf16.mxu0 %v851
    %1132 = vmatpush1.bf16.msra.mxu0 %v850
    %1133 = vmatprep.subr.bf16.mxu0 %v855
    %1134 = vmatpush1.bf16.msra.mxu0 %v854
    %1135 = vmatprep.subr.bf16.mxu0 %v859
    %1136 = vmatpush1.bf16.msra.mxu0 %v858
    %1137 = vmatprep.subr.bf16.mxu0 %v863
    %1138 = vmatpush1.bf16.msra.mxu0 %v862
    %1139 = vmatprep.subr.bf16.mxu0 %v867
    %1140 = vmatpush1.bf16.msra.mxu0 %v866
    %1141 = vmatprep.subr.bf16.mxu0 %v871
    %1142 = vmatpush1.bf16.msra.mxu0 %v870
    %1143 = vmatprep.subr.bf16.mxu0 %v875
    %1144 = vmatpush1.bf16.msra.mxu0 %v874
    %1145 = vmatprep.subr.bf16.mxu0 %v879
    %1146 = vmatpush1.bf16.msra.mxu0 %v878
    %1147 = vmatprep.subr.bf16.mxu0 %v883
    %1148 = vmatpush1.bf16.msra.mxu0 %v882
    %1149 = vmatprep.subr.bf16.mxu0 %v887
    %1150 = vmatpush1.bf16.msra.mxu0 %v886
    %1151 = vmatprep.subr.bf16.mxu0 %v891
    %1152 = vmatpush1.bf16.msra.mxu0 %v890
    %1153 = vmatprep.subr.bf16.mxu0 %v895
    %1154 = vmatpush1.bf16.msra.mxu0 %v894
    %1155 = vmatprep.subr.bf16.mxu0 %v899
    %1156 = vmatpush1.bf16.msra.mxu0 %v898
    %1157 = vmatprep.subr.bf16.mxu0 %v903
    %1158 = vmatpush1.bf16.msra.mxu0 %v902
    %1159 = vmatprep.subr.bf16.mxu0 %v907
    %1160 = vmatpush1.bf16.msra.mxu0 %v906
    %1161 = vmatprep.subr.bf16.mxu0 %v911
    %1162 = vmatpush1.bf16.msra.mxu0 %v910
    %1163 = vmatprep.mubr.bf16.mxu0 %v1089
    %1164 = vmatmul.mubr.bf16.gmra.mrb[0].mxu0 %v1088
    %v1165 = vpop.f32.mrb[0].mxu0
    %v1166 = vadd.f32 %v1125, %v1165
    %v1167 = vpop.f32.mrb[0].mxu0
    %v1168 = vadd.f32 %v1127, %v1167
    %v1169 = vpop.f32.mrb[0].mxu0
    %v1170 = vpop.f32.mrb[0].mxu0
    %1171 = vdwg.mxu0
    %1172 = vmatprep.subr.bf16.mxu0 %v789
    %1173 = vmatpush1.bf16.msra.mxu0 %v788
    %1174 = vmatprep.subr.bf16.mxu0 %v793
    %1175 = vmatpush1.bf16.msra.mxu0 %v792
    %1176 = vmatprep.subr.bf16.mxu0 %v797
    %1177 = vmatpush1.bf16.msra.mxu0 %v796
    %1178 = vmatprep.subr.bf16.mxu0 %v801
    %1179 = vmatpush1.bf16.msra.mxu0 %v800
    %1180 = vmatprep.subr.bf16.mxu0 %v805
    %1181 = vmatpush1.bf16.msra.mxu0 %v804
    %1182 = vmatprep.subr.bf16.mxu0 %v809
    %1183 = vmatpush1.bf16.msra.mxu0 %v808
    %1184 = vmatprep.subr.bf16.mxu0 %v813
    %1185 = vmatpush1.bf16.msra.mxu0 %v812
    %1186 = vmatprep.subr.bf16.mxu0 %v817
    %1187 = vmatpush1.bf16.msra.mxu0 %v816
    %1188 = vmatprep.subr.bf16.mxu0 %v821
    %1189 = vmatpush1.bf16.msra.mxu0 %v820
    %1190 = vmatprep.subr.bf16.mxu0 %v825
    %1191 = vmatpush1.bf16.msra.mxu0 %v824
    %1192 = vmatprep.subr.bf16.mxu0 %v829
    %1193 = vmatpush1.bf16.msra.mxu0 %v828
    %1194 = vmatprep.subr.bf16.mxu0 %v833
    %1195 = vmatpush1.bf16.msra.mxu0 %v832
    %1196 = vmatprep.subr.bf16.mxu0 %v837
    %1197 = vmatpush1.bf16.msra.mxu0 %v836
    %1198 = vmatprep.subr.bf16.mxu0 %v841
    %1199 = vmatpush1.bf16.msra.mxu0 %v840
    %1200 = vmatprep.subr.bf16.mxu0 %v845
    %1201 = vmatpush1.bf16.msra.mxu0 %v844
    %1202 = vmatprep.subr.bf16.mxu0 %v849
    %1203 = vmatpush1.bf16.msra.mxu0 %v848
    %1204 = vmatprep.mubr.bf16.mxu0 %v1087
    %1205 = vmatmul.mubr.bf16.gmra.mrb[0].mxu0 %v1086
    %v1206 = vpop.f32.mrb[0].mxu0
    %v1207 = vadd.f32 0.0, %v1206
    %v1208 = vpop.f32.mrb[0].mxu0
    %v1209 = vadd.f32 0.0, %v1208
    %v1210 = vpop.f32.mrb[0].mxu0
    %v1211 = vpop.f32.mrb[0].mxu0
    %1212 = vdwg.mxu0
    %1213 = vmatprep.subr.bf16.mxu0 %v853
    %1214 = vmatpush1.bf16.msra.mxu0 %v852
    %1215 = vmatprep.subr.bf16.mxu0 %v857
    %1216 = vmatpush1.bf16.msra.mxu0 %v856
    %1217 = vmatprep.subr.bf16.mxu0 %v861
    %1218 = vmatpush1.bf16.msra.mxu0 %v860
    %1219 = vmatprep.subr.bf16.mxu0 %v865
    %1220 = vmatpush1.bf16.msra.mxu0 %v864
    %1221 = vmatprep.subr.bf16.mxu0 %v869
    %1222 = vmatpush1.bf16.msra.mxu0 %v868
    %1223 = vmatprep.subr.bf16.mxu0 %v873
    %1224 = vmatpush1.bf16.msra.mxu0 %v872
    %1225 = vmatprep.subr.bf16.mxu0 %v877
    %1226 = vmatpush1.bf16.msra.mxu0 %v876
    %1227 = vmatprep.subr.bf16.mxu0 %v881
    %1228 = vmatpush1.bf16.msra.mxu0 %v880
    %1229 = vmatprep.subr.bf16.mxu0 %v885
    %1230 = vmatpush1.bf16.msra.mxu0 %v884
    %1231 = vmatprep.subr.bf16.mxu0 %v889
    %1232 = vmatpush1.bf16.msra.mxu0 %v888
    %1233 = vmatprep.subr.bf16.mxu0 %v893
    %1234 = vmatpush1.bf16.msra.mxu0 %v892
    %1235 = vmatprep.subr.bf16.mxu0 %v897
    %1236 = vmatpush1.bf16.msra.mxu0 %v896
    %1237 = vmatprep.subr.bf16.mxu0 %v901
    %1238 = vmatpush1.bf16.msra.mxu0 %v900
    %1239 = vmatprep.subr.bf16.mxu0 %v905
    %1240 = vmatpush1.bf16.msra.mxu0 %v904
    %1241 = vmatprep.subr.bf16.mxu0 %v909
    %1242 = vmatpush1.bf16.msra.mxu0 %v908
    %1243 = vmatprep.subr.bf16.mxu0 %v913
    %1244 = vmatpush1.bf16.msra.mxu0 %v912
    %1245 = vmatprep.mubr.bf16.mxu0 %v1089
    %1246 = vmatmul.mubr.bf16.gmra.mrb[0].mxu0 %v1088
    %v1247 = vpop.f32.mrb[0].mxu0
    %v1248 = vadd.f32 %v1207, %v1247
    %v1249 = vpop.f32.mrb[0].mxu0
    %v1250 = vadd.f32 %v1209, %v1249
    %v1251 = vpop.f32.mrb[0].mxu0
    %v1252 = vpop.f32.mrb[0].mxu0
    %1253 = vdwg.mxu0
    %v1254 = vadd.f32 %v673, %v1166
    %v1255 = vadd.f32 %v675, %v1168
    %v1256 = vadd.f32 %v746, %v1248
    %v1257 = vadd.f32 %v748, %v1250
    %v1258 = vtanh.pop %v1254
    %v1259 = vtanh.pop %v1255
    %v1260 = vtanh.pop %v1256
    %v1261 = vtanh.pop %v1257
    %v1262 = vpack.c.bf16 %v1258, %v1258
    %v1263 = vpack.c.bf16 %v1259, %v1259
    %v1264 = vpack.c.bf16 %v1260, %v1260
    %v1265 = vpack.c.bf16 %v1261, %v1261
    %1266 = vmatprep.subr.bf16.mxu0 %v787
    %1267 = vmatpush1.bf16.msra.mxu0 %v786
    %1268 = vmatprep.subr.bf16.mxu0 %v791
    %1269 = vmatpush1.bf16.msra.mxu0 %v790
    %1270 = vmatprep.subr.bf16.mxu0 %v795
    %1271 = vmatpush1.bf16.msra.mxu0 %v794
    %1272 = vmatprep.subr.bf16.mxu0 %v799
    %1273 = vmatpush1.bf16.msra.mxu0 %v798
    %1274 = vmatprep.subr.bf16.mxu0 %v803
    %1275 = vmatpush1.bf16.msra.mxu0 %v802
    %1276 = vmatprep.subr.bf16.mxu0 %v807
    %1277 = vmatpush1.bf16.msra.mxu0 %v806
    %1278 = vmatprep.subr.bf16.mxu0 %v811
    %1279 = vmatpush1.bf16.msra.mxu0 %v810
    %1280 = vmatprep.subr.bf16.mxu0 %v815
    %1281 = vmatpush1.bf16.msra.mxu0 %v814
    %1282 = vmatprep.subr.bf16.mxu0 %v819
    %1283 = vmatpush1.bf16.msra.mxu0 %v818
    %1284 = vmatprep.subr.bf16.mxu0 %v823
    %1285 = vmatpush1.bf16.msra.mxu0 %v822
    %1286 = vmatprep.subr.bf16.mxu0 %v827
    %1287 = vmatpush1.bf16.msra.mxu0 %v826
    %1288 = vmatprep.subr.bf16.mxu0 %v831
    %1289 = vmatpush1.bf16.msra.mxu0 %v830
    %1290 = vmatprep.subr.bf16.mxu0 %v835
    %1291 = vmatpush1.bf16.msra.mxu0 %v834
    %1292 = vmatprep.subr.bf16.mxu0 %v839
    %1293 = vmatpush1.bf16.msra.mxu0 %v838
    %1294 = vmatprep.subr.bf16.mxu0 %v843
    %1295 = vmatpush1.bf16.msra.mxu0 %v842
    %1296 = vmatprep.subr.bf16.mxu0 %v847
    %1297 = vmatpush1.bf16.msra.mxu0 %v846
    %1298 = vmatprep.mubr.bf16.mxu0 %v1263
    %1299 = vmatmul.mubr.bf16.gmra.mrb[0].mxu0 %v1262
    %v1300 = vpop.f32.mrb[0].mxu0
    %v1301 = vadd.f32 0.0, %v1300
    %v1302 = vpop.f32.mrb[0].mxu0
    %v1303 = vadd.f32 0.0, %v1302
    %v1304 = vpop.f32.mrb[0].mxu0
    %v1305 = vpop.f32.mrb[0].mxu0
    %1306 = vdwg.mxu0
    %1307 = vmatprep.subr.bf16.mxu0 %v851
    %1308 = vmatpush1.bf16.msra.mxu0 %v850
    %1309 = vmatprep.subr.bf16.mxu0 %v855
    %1310 = vmatpush1.bf16.msra.mxu0 %v854
    %1311 = vmatprep.subr.bf16.mxu0 %v859
    %1312 = vmatpush1.bf16.msra.mxu0 %v858
    %1313 = vmatprep.subr.bf16.mxu0 %v863
    %1314 = vmatpush1.bf16.msra.mxu0 %v862
    %1315 = vmatprep.subr.bf16.mxu0 %v867
    %1316 = vmatpush1.bf16.msra.mxu0 %v866
    %1317 = vmatprep.subr.bf16.mxu0 %v871
    %1318 = vmatpush1.bf16.msra.mxu0 %v870
    %1319 = vmatprep.subr.bf16.mxu0 %v875
    %1320 = vmatpush1.bf16.msra.mxu0 %v874
    %1321 = vmatprep.subr.bf16.mxu0 %v879
    %1322 = vmatpush1.bf16.msra.mxu0 %v878
    %1323 = vmatprep.subr.bf16.mxu0 %v883
    %1324 = vmatpush1.bf16.msra.mxu0 %v882
    %1325 = vmatprep.subr.bf16.mxu0 %v887
    %1326 = vmatpush1.bf16.msra.mxu0 %v886
    %1327 = vmatprep.subr.bf16.mxu0 %v891
    %1328 = vmatpush1.bf16.msra.mxu0 %v890
    %1329 = vmatprep.subr.bf16.mxu0 %v895
    %1330 = vmatpush1.bf16.msra.mxu0 %v894
    %1331 = vmatprep.subr.bf16.mxu0 %v899
    %1332 = vmatpush1.bf16.msra.mxu0 %v898
    %1333 = vmatprep.subr.bf16.mxu0 %v903
    %1334 = vmatpush1.bf16.msra.mxu0 %v902
    %1335 = vmatprep.subr.bf16.mxu0 %v907
    %1336 = vmatpush1.bf16.msra.mxu0 %v906
    %1337 = vmatprep.subr.bf16.mxu0 %v911
    %1338 = vmatpush1.bf16.msra.mxu0 %v910
    %1339 = vmatprep.mubr.bf16.mxu0 %v1265
    %1340 = vmatmul.mubr.bf16.gmra.mrb[0].mxu0 %v1264
    %v1341 = vpop.f32.mrb[0].mxu0
    %v1342 = vadd.f32 %v1301, %v1341
    %v1343 = vpop.f32.mrb[0].mxu0
    %v1344 = vadd.f32 %v1303, %v1343
    %v1345 = vpop.f32.mrb[0].mxu0
    %v1346 = vpop.f32.mrb[0].mxu0
    %1347 = vdwg.mxu0
    %1348 = vmatprep.subr.bf16.mxu0 %v789
    %1349 = vmatpush1.bf16.msra.mxu0 %v788
    %1350 = vmatprep.subr.bf16.mxu0 %v793
    %1351 = vmatpush1.bf16.msra.mxu0 %v792
    %1352 = vmatprep.subr.bf16.mxu0 %v797
    %1353 = vmatpush1.bf16.msra.mxu0 %v796
    %1354 = vmatprep.subr.bf16.mxu0 %v801
    %1355 = vmatpush1.bf16.msra.mxu0 %v800
    %1356 = vmatprep.subr.bf16.mxu0 %v805
    %1357 = vmatpush1.bf16.msra.mxu0 %v804
    %1358 = vmatprep.subr.bf16.mxu0 %v809
    %1359 = vmatpush1.bf16.msra.mxu0 %v808
    %1360 = vmatprep.subr.bf16.mxu0 %v813
    %1361 = vmatpush1.bf16.msra.mxu0 %v812
    %1362 = vmatprep.subr.bf16.mxu0 %v817
    %1363 = vmatpush1.bf16.msra.mxu0 %v816
    %1364 = vmatprep.subr.bf16.mxu0 %v821
    %1365 = vmatpush1.bf16.msra.mxu0 %v820
    %1366 = vmatprep.subr.bf16.mxu0 %v825
    %1367 = vmatpush1.bf16.msra.mxu0 %v824
    %1368 = vmatprep.subr.bf16.mxu0 %v829
    %1369 = vmatpush1.bf16.msra.mxu0 %v828
    %1370 = vmatprep.subr.bf16.mxu0 %v833
    %1371 = vmatpush1.bf16.msra.mxu0 %v832
    %1372 = vmatprep.subr.bf16.mxu0 %v837
    %1373 = vmatpush1.bf16.msra.mxu0 %v836
    %1374 = vmatprep.subr.bf16.mxu0 %v841
    %1375 = vmatpush1.bf16.msra.mxu0 %v840
    %1376 = vmatprep.subr.bf16.mxu0 %v845
    %1377 = vmatpush1.bf16.msra.mxu0 %v844
    %1378 = vmatprep.subr.bf16.mxu0 %v849
    %1379 = vmatpush1.bf16.msra.mxu0 %v848
    %1380 = vmatprep.mubr.bf16.mxu0 %v1263
    %1381 = vmatmul.mubr.bf16.gmra.mrb[0].mxu0 %v1262
    %v1382 = vpop.f32.mrb[0].mxu0
    %v1383 = vadd.f32 0.0, %v1382
    %v1384 = vpop.f32.mrb[0].mxu0
    %v1385 = vadd.f32 0.0, %v1384
    %v1386 = vpop.f32.mrb[0].mxu0
    %v1387 = vpop.f32.mrb[0].mxu0
    %1388 = vdwg.mxu0
    %1389 = vmatprep.subr.bf16.mxu0 %v853
    %1390 = vmatpush1.bf16.msra.mxu0 %v852
    %1391 = vmatprep.subr.bf16.mxu0 %v857
    %1392 = vmatpush1.bf16.msra.mxu0 %v856
    %1393 = vmatprep.subr.bf16.mxu0 %v861
    %1394 = vmatpush1.bf16.msra.mxu0 %v860
    %1395 = vmatprep.subr.bf16.mxu0 %v865
    %1396 = vmatpush1.bf16.msra.mxu0 %v864
    %1397 = vmatprep.subr.bf16.mxu0 %v869
    %1398 = vmatpush1.bf16.msra.mxu0 %v868
    %1399 = vmatprep.subr.bf16.mxu0 %v873
    %1400 = vmatpush1.bf16.msra.mxu0 %v872
    %1401 = vmatprep.subr.bf16.mxu0 %v877
    %1402 = vmatpush1.bf16.msra.mxu0 %v876
    %1403 = vmatprep.subr.bf16.mxu0 %v881
    %1404 = vmatpush1.bf16.msra.mxu0 %v880
    %1405 = vmatprep.subr.bf16.mxu0 %v885
    %1406 = vmatpush1.bf16.msra.mxu0 %v884
    %1407 = vmatprep.subr.bf16.mxu0 %v889
    %1408 = vmatpush1.bf16.msra.mxu0 %v888
    %1409 = vmatprep.subr.bf16.mxu0 %v893
    %1410 = vmatpush1.bf16.msra.mxu0 %v892
    %1411 = vmatprep.subr.bf16.mxu0 %v897
    %1412 = vmatpush1.bf16.msra.mxu0 %v896
    %1413 = vmatprep.subr.bf16.mxu0 %v901
    %1414 = vmatpush1.bf16.msra.mxu0 %v900
    %1415 = vmatprep.subr.bf16.mxu0 %v905
    %1416 = vmatpush1.bf16.msra.mxu0 %v904
    %1417 = vmatprep.subr.bf16.mxu0 %v909
    %1418 = vmatpush1.bf16.msra.mxu0 %v908
    %1419 = vmatprep.subr.bf16.mxu0 %v913
    %1420 = vmatpush1.bf16.msra.mxu0 %v912
    %1421 = vmatprep.mubr.bf16.mxu0 %v1265
    %1422 = vmatmul.mubr.bf16.gmra.mrb[0].mxu0 %v1264
    %v1423 = vpop.f32.mrb[0].mxu0
    %v1424 = vadd.f32 %v1383, %v1423
    %v1425 = vpop.f32.mrb[0].mxu0
    %v1426 = vadd.f32 %v1385, %v1425
    %v1427 = vpop.f32.mrb[0].mxu0
    %v1428 = vpop.f32.mrb[0].mxu0
    %1429 = vdwg.mxu0
    %v1430 = vadd.f32 %v677, %v1342
    %v1431 = vadd.f32 %v679, %v1344
    %v1432 = vadd.f32 %v750, %v1424
    %v1433 = vadd.f32 %v752, %v1426
    %v1434 = vtanh.pop %v1430
    %v1435 = vtanh.pop %v1431
    %v1436 = vtanh.pop %v1432
    %v1437 = vtanh.pop %v1433
    %v1438 = vpack.c.bf16 %v1434, %v1434
    %v1439 = vpack.c.bf16 %v1435, %v1435
    %v1440 = vpack.c.bf16 %v1436, %v1436
    %v1441 = vpack.c.bf16 %v1437, %v1437
    %1442 = vmatprep.subr.bf16.mxu0 %v787
    %1443 = vmatpush1.bf16.msra.mxu0 %v786
    %1444 = vmatprep.subr.bf16.mxu0 %v791
    %1445 = vmatpush1.bf16.msra.mxu0 %v790
    %1446 = vmatprep.subr.bf16.mxu0 %v795
    %1447 = vmatpush1.bf16.msra.mxu0 %v794
    %1448 = vmatprep.subr.bf16.mxu0 %v799
    %1449 = vmatpush1.bf16.msra.mxu0 %v798
    %1450 = vmatprep.subr.bf16.mxu0 %v803
    %1451 = vmatpush1.bf16.msra.mxu0 %v802
    %1452 = vmatprep.subr.bf16.mxu0 %v807
    %1453 = vmatpush1.bf16.msra.mxu0 %v806
    %1454 = vmatprep.subr.bf16.mxu0 %v811
    %1455 = vmatpush1.bf16.msra.mxu0 %v810
    %1456 = vmatprep.subr.bf16.mxu0 %v815
    %1457 = vmatpush1.bf16.msra.mxu0 %v814
    %1458 = vmatprep.subr.bf16.mxu0 %v819
    %1459 = vmatpush1.bf16.msra.mxu0 %v818
    %1460 = vmatprep.subr.bf16.mxu0 %v823
    %1461 = vmatpush1.bf16.msra.mxu0 %v822
    %1462 = vmatprep.subr.bf16.mxu0 %v827
    %1463 = vmatpush1.bf16.msra.mxu0 %v826
    %1464 = vmatprep.subr.bf16.mxu0 %v831
    %1465 = vmatpush1.bf16.msra.mxu0 %v830
    %1466 = vmatprep.subr.bf16.mxu0 %v835
    %1467 = vmatpush1.bf16.msra.mxu0 %v834
    %1468 = vmatprep.subr.bf16.mxu0 %v839
    %1469 = vmatpush1.bf16.msra.mxu0 %v838
    %1470 = vmatprep.subr.bf16.mxu0 %v843
    %1471 = vmatpush1.bf16.msra.mxu0 %v842
    %1472 = vmatprep.subr.bf16.mxu0 %v847
    %1473 = vmatpush1.bf16.msra.mxu0 %v846
    %1474 = vmatprep.mubr.bf16.mxu0 %v1439
    %1475 = vmatmul.mubr.bf16.gmra.mrb[0].mxu0 %v1438
    %v1476 = vpop.f32.mrb[0].mxu0
    %v1477 = vadd.f32 0.0, %v1476
    %v1478 = vpop.f32.mrb[0].mxu0
    %v1479 = vadd.f32 0.0, %v1478
    %v1480 = vpop.f32.mrb[0].mxu0
    %v1481 = vpop.f32.mrb[0].mxu0
    %1482 = vdwg.mxu0
    %1483 = vmatprep.subr.bf16.mxu0 %v851
    %1484 = vmatpush1.bf16.msra.mxu0 %v850
    %1485 = vmatprep.subr.bf16.mxu0 %v855
    %1486 = vmatpush1.bf16.msra.mxu0 %v854
    %1487 = vmatprep.subr.bf16.mxu0 %v859
    %1488 = vmatpush1.bf16.msra.mxu0 %v858
    %1489 = vmatprep.subr.bf16.mxu0 %v863
    %1490 = vmatpush1.bf16.msra.mxu0 %v862
    %1491 = vmatprep.subr.bf16.mxu0 %v867
    %1492 = vmatpush1.bf16.msra.mxu0 %v866
    %1493 = vmatprep.subr.bf16.mxu0 %v871
    %1494 = vmatpush1.bf16.msra.mxu0 %v870
    %1495 = vmatprep.subr.bf16.mxu0 %v875
    %1496 = vmatpush1.bf16.msra.mxu0 %v874
    %1497 = vmatprep.subr.bf16.mxu0 %v879
    %1498 = vmatpush1.bf16.msra.mxu0 %v878
    %1499 = vmatprep.subr.bf16.mxu0 %v883
    %1500 = vmatpush1.bf16.msra.mxu0 %v882
    %1501 = vmatprep.subr.bf16.mxu0 %v887
    %1502 = vmatpush1.bf16.msra.mxu0 %v886
    %1503 = vmatprep.subr.bf16.mxu0 %v891
    %1504 = vmatpush1.bf16.msra.mxu0 %v890
    %1505 = vmatprep.subr.bf16.mxu0 %v895
    %1506 = vmatpush1.bf16.msra.mxu0 %v894
    %1507 = vmatprep.subr.bf16.mxu0 %v899
    %1508 = vmatpush1.bf16.msra.mxu0 %v898
    %1509 = vmatprep.subr.bf16.mxu0 %v903
    %1510 = vmatpush1.bf16.msra.mxu0 %v902
    %1511 = vmatprep.subr.bf16.mxu0 %v907
    %1512 = vmatpush1.bf16.msra.mxu0 %v906
    %1513 = vmatprep.subr.bf16.mxu0 %v911
    %1514 = vmatpush1.bf16.msra.mxu0 %v910
    %1515 = vmatprep.mubr.bf16.mxu0 %v1441
    %1516 = vmatmul.mubr.bf16.gmra.mrb[0].mxu0 %v1440
    %v1517 = vpop.f32.mrb[0].mxu0
    %v1518 = vadd.f32 %v1477, %v1517
    %v1519 = vpop.f32.mrb[0].mxu0
    %v1520 = vadd.f32 %v1479, %v1519
    %v1521 = vpop.f32.mrb[0].mxu0
    %v1522 = vpop.f32.mrb[0].mxu0
    %1523 = vdwg.mxu0
    %1524 = vmatprep.subr.bf16.mxu0 %v789
    %1525 = vmatpush1.bf16.msra.mxu0 %v788
    %1526 = vmatprep.subr.bf16.mxu0 %v793
    %1527 = vmatpush1.bf16.msra.mxu0 %v792
    %1528 = vmatprep.subr.bf16.mxu0 %v797
    %1529 = vmatpush1.bf16.msra.mxu0 %v796
    %1530 = vmatprep.subr.bf16.mxu0 %v801
    %1531 = vmatpush1.bf16.msra.mxu0 %v800
    %1532 = vmatprep.subr.bf16.mxu0 %v805
    %1533 = vmatpush1.bf16.msra.mxu0 %v804
    %1534 = vmatprep.subr.bf16.mxu0 %v809
    %1535 = vmatpush1.bf16.msra.mxu0 %v808
    %1536 = vmatprep.subr.bf16.mxu0 %v813
    %1537 = vmatpush1.bf16.msra.mxu0 %v812
    %1538 = vmatprep.subr.bf16.mxu0 %v817
    %1539 = vmatpush1.bf16.msra.mxu0 %v816
    %1540 = vmatprep.subr.bf16.mxu0 %v821
    %1541 = vmatpush1.bf16.msra.mxu0 %v820
    %1542 = vmatprep.subr.bf16.mxu0 %v825
    %1543 = vmatpush1.bf16.msra.mxu0 %v824
    %1544 = vmatprep.subr.bf16.mxu0 %v829
    %1545 = vmatpush1.bf16.msra.mxu0 %v828
    %1546 = vmatprep.subr.bf16.mxu0 %v833
    %1547 = vmatpush1.bf16.msra.mxu0 %v832
    %1548 = vmatprep.subr.bf16.mxu0 %v837
    %1549 = vmatpush1.bf16.msra.mxu0 %v836
    %1550 = vmatprep.subr.bf16.mxu0 %v841
    %1551 = vmatpush1.bf16.msra.mxu0 %v840
    %1552 = vmatprep.subr.bf16.mxu0 %v845
    %1553 = vmatpush1.bf16.msra.mxu0 %v844
    %1554 = vmatprep.subr.bf16.mxu0 %v849
    %1555 = vmatpush1.bf16.msra.mxu0 %v848
    %1556 = vmatprep.mubr.bf16.mxu0 %v1439
    %1557 = vmatmul.mubr.bf16.gmra.mrb[0].mxu0 %v1438
    %v1558 = vpop.f32.mrb[0].mxu0
    %v1559 = vadd.f32 0.0, %v1558
    %v1560 = vpop.f32.mrb[0].mxu0
    %v1561 = vadd.f32 0.0, %v1560
    %v1562 = vpop.f32.mrb[0].mxu0
    %v1563 = vpop.f32.mrb[0].mxu0
    %1564 = vdwg.mxu0
    %1565 = vmatprep.subr.bf16.mxu0 %v853
    %1566 = vmatpush1.bf16.msra.mxu0 %v852
    %1567 = vmatprep.subr.bf16.mxu0 %v857
    %1568 = vmatpush1.bf16.msra.mxu0 %v856
    %1569 = vmatprep.subr.bf16.mxu0 %v861
    %1570 = vmatpush1.bf16.msra.mxu0 %v860
    %1571 = vmatprep.subr.bf16.mxu0 %v865
    %1572 = vmatpush1.bf16.msra.mxu0 %v864
    %1573 = vmatprep.subr.bf16.mxu0 %v869
    %1574 = vmatpush1.bf16.msra.mxu0 %v868
    %1575 = vmatprep.subr.bf16.mxu0 %v873
    %1576 = vmatpush1.bf16.msra.mxu0 %v872
    %1577 = vmatprep.subr.bf16.mxu0 %v877
    %1578 = vmatpush1.bf16.msra.mxu0 %v876
    %1579 = vmatprep.subr.bf16.mxu0 %v881
    %1580 = vmatpush1.bf16.msra.mxu0 %v880
    %1581 = vmatprep.subr.bf16.mxu0 %v885
    %1582 = vmatpush1.bf16.msra.mxu0 %v884
    %1583 = vmatprep.subr.bf16.mxu0 %v889
    %1584 = vmatpush1.bf16.msra.mxu0 %v888
    %1585 = vmatprep.subr.bf16.mxu0 %v893
    %1586 = vmatpush1.bf16.msra.mxu0 %v892
    %1587 = vmatprep.subr.bf16.mxu0 %v897
    %1588 = vmatpush1.bf16.msra.mxu0 %v896
    %1589 = vmatprep.subr.bf16.mxu0 %v901
    %1590 = vmatpush1.bf16.msra.mxu0 %v900
    %1591 = vmatprep.subr.bf16.mxu0 %v905
    %1592 = vmatpush1.bf16.msra.mxu0 %v904
    %1593 = vmatprep.subr.bf16.mxu0 %v909
    %1594 = vmatpush1.bf16.msra.mxu0 %v908
    %1595 = vmatprep.subr.bf16.mxu0 %v913
    %1596 = vmatpush1.bf16.msra.mxu0 %v912
    %1597 = vmatprep.mubr.bf16.mxu0 %v1441
    %1598 = vmatmul.mubr.bf16.gmra.mrb[0].mxu0 %v1440
    %v1599 = vpop.f32.mrb[0].mxu0
    %v1600 = vadd.f32 %v1559, %v1599
    %v1601 = vpop.f32.mrb[0].mxu0
    %v1602 = vadd.f32 %v1561, %v1601
    %v1603 = vpop.f32.mrb[0].mxu0
    %v1604 = vpop.f32.mrb[0].mxu0
    %1605 = vdwg.mxu0
    %v1606 = vadd.f32 %v683, %v1518
    %v1607 = vadd.f32 %v685, %v1520
    %v1608 = vadd.f32 %v756, %v1600
    %v1609 = vadd.f32 %v758, %v1602
    %v1610 = vtanh.pop %v1606
    %v1611 = vtanh.pop %v1607
    %v1612 = vtanh.pop %v1608
    %v1613 = vtanh.pop %v1609
    %v1614 = vpack.c.bf16 %v1610, %v1610
    %v1615 = vpack.c.bf16 %v1611, %v1611
    %v1616 = vpack.c.bf16 %v1612, %v1612
    %v1617 = vpack.c.bf16 %v1613, %v1613
    %1618 = vmatprep.subr.bf16.mxu0 %v787
    %1619 = vmatpush1.bf16.msra.mxu0 %v786
    %1620 = vmatprep.subr.bf16.mxu0 %v791
    %1621 = vmatpush1.bf16.msra.mxu0 %v790
    %1622 = vmatprep.subr.bf16.mxu0 %v795
    %1623 = vmatpush1.bf16.msra.mxu0 %v794
    %1624 = vmatprep.subr.bf16.mxu0 %v799
    %1625 = vmatpush1.bf16.msra.mxu0 %v798
    %1626 = vmatprep.subr.bf16.mxu0 %v803
    %1627 = vmatpush1.bf16.msra.mxu0 %v802
    %1628 = vmatprep.subr.bf16.mxu0 %v807
    %1629 = vmatpush1.bf16.msra.mxu0 %v806
    %1630 = vmatprep.subr.bf16.mxu0 %v811
    %1631 = vmatpush1.bf16.msra.mxu0 %v810
    %1632 = vmatprep.subr.bf16.mxu0 %v815
    %1633 = vmatpush1.bf16.msra.mxu0 %v814
    %1634 = vmatprep.subr.bf16.mxu0 %v819
    %1635 = vmatpush1.bf16.msra.mxu0 %v818
    %1636 = vmatprep.subr.bf16.mxu0 %v823
    %1637 = vmatpush1.bf16.msra.mxu0 %v822
    %1638 = vmatprep.subr.bf16.mxu0 %v827
    %1639 = vmatpush1.bf16.msra.mxu0 %v826
    %1640 = vmatprep.subr.bf16.mxu0 %v831
    %1641 = vmatpush1.bf16.msra.mxu0 %v830
    %1642 = vmatprep.subr.bf16.mxu0 %v835
    %1643 = vmatpush1.bf16.msra.mxu0 %v834
    %1644 = vmatprep.subr.bf16.mxu0 %v839
    %1645 = vmatpush1.bf16.msra.mxu0 %v838
    %1646 = vmatprep.subr.bf16.mxu0 %v843
    %1647 = vmatpush1.bf16.msra.mxu0 %v842
    %1648 = vmatprep.subr.bf16.mxu0 %v847
    %1649 = vmatpush1.bf16.msra.mxu0 %v846
    %1650 = vmatprep.mubr.bf16.mxu0 %v1615
    %1651 = vmatmul.mubr.bf16.gmra.mrb[0].mxu0 %v1614
    %v1652 = vpop.f32.mrb[0].mxu0
    %v1653 = vadd.f32 0.0, %v1652
    %v1654 = vpop.f32.mrb[0].mxu0
    %v1655 = vadd.f32 0.0, %v1654
    %v1656 = vpop.f32.mrb[0].mxu0
    %v1657 = vpop.f32.mrb[0].mxu0
    %1658 = vdwg.mxu0
    %1659 = vmatprep.subr.bf16.mxu0 %v851
    %1660 = vmatpush1.bf16.msra.mxu0 %v850
    %1661 = vmatprep.subr.bf16.mxu0 %v855
    %1662 = vmatpush1.bf16.msra.mxu0 %v854
    %1663 = vmatprep.subr.bf16.mxu0 %v859
    %1664 = vmatpush1.bf16.msra.mxu0 %v858
    %1665 = vmatprep.subr.bf16.mxu0 %v863
    %1666 = vmatpush1.bf16.msra.mxu0 %v862
    %1667 = vmatprep.subr.bf16.mxu0 %v867
    %1668 = vmatpush1.bf16.msra.mxu0 %v866
    %1669 = vmatprep.subr.bf16.mxu0 %v871
    %1670 = vmatpush1.bf16.msra.mxu0 %v870
    %1671 = vmatprep.subr.bf16.mxu0 %v875
    %1672 = vmatpush1.bf16.msra.mxu0 %v874
    %1673 = vmatprep.subr.bf16.mxu0 %v879
    %1674 = vmatpush1.bf16.msra.mxu0 %v878
    %1675 = vmatprep.subr.bf16.mxu0 %v883
    %1676 = vmatpush1.bf16.msra.mxu0 %v882
    %1677 = vmatprep.subr.bf16.mxu0 %v887
    %1678 = vmatpush1.bf16.msra.mxu0 %v886
    %1679 = vmatprep.subr.bf16.mxu0 %v891
    %1680 = vmatpush1.bf16.msra.mxu0 %v890
    %1681 = vmatprep.subr.bf16.mxu0 %v895
    %1682 = vmatpush1.bf16.msra.mxu0 %v894
    %1683 = vmatprep.subr.bf16.mxu0 %v899
    %1684 = vmatpush1.bf16.msra.mxu0 %v898
    %1685 = vmatprep.subr.bf16.mxu0 %v903
    %1686 = vmatpush1.bf16.msra.mxu0 %v902
    %1687 = vmatprep.subr.bf16.mxu0 %v907
    %1688 = vmatpush1.bf16.msra.mxu0 %v906
    %1689 = vmatprep.subr.bf16.mxu0 %v911
    %1690 = vmatpush1.bf16.msra.mxu0 %v910
    %1691 = vmatprep.mubr.bf16.mxu0 %v1617
    %1692 = vmatmul.mubr.bf16.gmra.mrb[0].mxu0 %v1616
    %v1693 = vpop.f32.mrb[0].mxu0
    %v1694 = vadd.f32 %v1653, %v1693
    %v1695 = vpop.f32.mrb[0].mxu0
    %v1696 = vadd.f32 %v1655, %v1695
    %v1697 = vpop.f32.mrb[0].mxu0
    %v1698 = vpop.f32.mrb[0].mxu0
    %1699 = vdwg.mxu0
    %1700 = vmatprep.subr.bf16.mxu0 %v789
    %1701 = vmatpush1.bf16.msra.mxu0 %v788
    %1702 = vmatprep.subr.bf16.mxu0 %v793
    %1703 = vmatpush1.bf16.msra.mxu0 %v792
    %1704 = vmatprep.subr.bf16.mxu0 %v797
    %1705 = vmatpush1.bf16.msra.mxu0 %v796
    %1706 = vmatprep.subr.bf16.mxu0 %v801
    %1707 = vmatpush1.bf16.msra.mxu0 %v800
    %1708 = vmatprep.subr.bf16.mxu0 %v805
    %1709 = vmatpush1.bf16.msra.mxu0 %v804
    %1710 = vmatprep.subr.bf16.mxu0 %v809
    %1711 = vmatpush1.bf16.msra.mxu0 %v808
    %1712 = vmatprep.subr.bf16.mxu0 %v813
    %1713 = vmatpush1.bf16.msra.mxu0 %v812
    %1714 = vmatprep.subr.bf16.mxu0 %v817
    %1715 = vmatpush1.bf16.msra.mxu0 %v816
    %1716 = vmatprep.subr.bf16.mxu0 %v821
    %1717 = vmatpush1.bf16.msra.mxu0 %v820
    %1718 = vmatprep.subr.bf16.mxu0 %v825
    %1719 = vmatpush1.bf16.msra.mxu0 %v824
    %1720 = vmatprep.subr.bf16.mxu0 %v829
    %1721 = vmatpush1.bf16.msra.mxu0 %v828
    %1722 = vmatprep.subr.bf16.mxu0 %v833
    %1723 = vmatpush1.bf16.msra.mxu0 %v832
    %1724 = vmatprep.subr.bf16.mxu0 %v837
    %1725 = vmatpush1.bf16.msra.mxu0 %v836
    %1726 = vmatprep.subr.bf16.mxu0 %v841
    %1727 = vmatpush1.bf16.msra.mxu0 %v840
    %1728 = vmatprep.subr.bf16.mxu0 %v845
    %1729 = vmatpush1.bf16.msra.mxu0 %v844
    %1730 = vmatprep.subr.bf16.mxu0 %v849
    %1731 = vmatpush1.bf16.msra.mxu0 %v848
    %1732 = vmatprep.mubr.bf16.mxu0 %v1615
    %1733 = vmatmul.mubr.bf16.gmra.mrb[0].mxu0 %v1614
    %v1734 = vpop.f32.mrb[0].mxu0
    %v1735 = vadd.f32 0.0, %v1734
    %v1736 = vpop.f32.mrb[0].mxu0
    %v1737 = vadd.f32 0.0, %v1736
    %v1738 = vpop.f32.mrb[0].mxu0
    %v1739 = vpop.f32.mrb[0].mxu0
    %1740 = vdwg.mxu0
    %1741 = vmatprep.subr.bf16.mxu0 %v853
    %1742 = vmatpush1.bf16.msra.mxu0 %v852
    %1743 = vmatprep.subr.bf16.mxu0 %v857
    %1744 = vmatpush1.bf16.msra.mxu0 %v856
    %1745 = vmatprep.subr.bf16.mxu0 %v861
    %1746 = vmatpush1.bf16.msra.mxu0 %v860
    %1747 = vmatprep.subr.bf16.mxu0 %v865
    %1748 = vmatpush1.bf16.msra.mxu0 %v864
    %1749 = vmatprep.subr.bf16.mxu0 %v869
    %1750 = vmatpush1.bf16.msra.mxu0 %v868
    %1751 = vmatprep.subr.bf16.mxu0 %v873
    %1752 = vmatpush1.bf16.msra.mxu0 %v872
    %1753 = vmatprep.subr.bf16.mxu0 %v877
    %1754 = vmatpush1.bf16.msra.mxu0 %v876
    %1755 = vmatprep.subr.bf16.mxu0 %v881
    %1756 = vmatpush1.bf16.msra.mxu0 %v880
    %1757 = vmatprep.subr.bf16.mxu0 %v885
    %1758 = vmatpush1.bf16.msra.mxu0 %v884
    %1759 = vmatprep.subr.bf16.mxu0 %v889
    %1760 = vmatpush1.bf16.msra.mxu0 %v888
    %1761 = vmatprep.subr.bf16.mxu0 %v893
    %1762 = vmatpush1.bf16.msra.mxu0 %v892
    %1763 = vmatprep.subr.bf16.mxu0 %v897
    %1764 = vmatpush1.bf16.msra.mxu0 %v896
    %1765 = vmatprep.subr.bf16.mxu0 %v901
    %1766 = vmatpush1.bf16.msra.mxu0 %v900
    %1767 = vmatprep.subr.bf16.mxu0 %v905
    %1768 = vmatpush1.bf16.msra.mxu0 %v904
    %1769 = vmatprep.subr.bf16.mxu0 %v909
    %1770 = vmatpush1.bf16.msra.mxu0 %v908
    %1771 = vmatprep.subr.bf16.mxu0 %v913
    %1772 = vmatpush1.bf16.msra.mxu0 %v912
    %1773 = vmatprep.mubr.bf16.mxu0 %v1617
    %1774 = vmatmul.mubr.bf16.gmra.mrb[0].mxu0 %v1616
    %v1775 = vpop.f32.mrb[0].mxu0
    %v1776 = vadd.f32 %v1735, %v1775
    %v1777 = vpop.f32.mrb[0].mxu0
    %v1778 = vadd.f32 %v1737, %v1777
    %v1779 = vpop.f32.mrb[0].mxu0
    %v1780 = vpop.f32.mrb[0].mxu0
    %1781 = vdwg.mxu0
    %v1782 = vadd.f32 %v687, %v1694
    %v1783 = vadd.f32 %v689, %v1696
    %v1784 = vadd.f32 %v760, %v1776
    %v1785 = vadd.f32 %v762, %v1778
    %v1786 = vtanh.pop %v1782
    %v1787 = vtanh.pop %v1783
    %v1788 = vtanh.pop %v1784
    %v1789 = vtanh.pop %v1785
    %v1790 = vpack.c.bf16 %v1786, %v1786
    %v1791 = vpack.c.bf16 %v1787, %v1787
    %v1792 = vpack.c.bf16 %v1788, %v1788
    %v1793 = vpack.c.bf16 %v1789, %v1789
    %1794 = vmatprep.subr.bf16.mxu0 %v787
    %1795 = vmatpush1.bf16.msra.mxu0 %v786
    %1796 = vmatprep.subr.bf16.mxu0 %v791
    %1797 = vmatpush1.bf16.msra.mxu0 %v790
    %1798 = vmatprep.subr.bf16.mxu0 %v795
    %1799 = vmatpush1.bf16.msra.mxu0 %v794
    %1800 = vmatprep.subr.bf16.mxu0 %v799
    %1801 = vmatpush1.bf16.msra.mxu0 %v798
    %1802 = vmatprep.subr.bf16.mxu0 %v803
    %1803 = vmatpush1.bf16.msra.mxu0 %v802
    %1804 = vmatprep.subr.bf16.mxu0 %v807
    %1805 = vmatpush1.bf16.msra.mxu0 %v806
    %1806 = vmatprep.subr.bf16.mxu0 %v811
    %1807 = vmatpush1.bf16.msra.mxu0 %v810
    %1808 = vmatprep.subr.bf16.mxu0 %v815
    %1809 = vmatpush1.bf16.msra.mxu0 %v814
    %1810 = vmatprep.subr.bf16.mxu0 %v819
    %1811 = vmatpush1.bf16.msra.mxu0 %v818
    %1812 = vmatprep.subr.bf16.mxu0 %v823
    %1813 = vmatpush1.bf16.msra.mxu0 %v822
    %1814 = vmatprep.subr.bf16.mxu0 %v827
    %1815 = vmatpush1.bf16.msra.mxu0 %v826
    %1816 = vmatprep.subr.bf16.mxu0 %v831
    %1817 = vmatpush1.bf16.msra.mxu0 %v830
    %1818 = vmatprep.subr.bf16.mxu0 %v835
    %1819 = vmatpush1.bf16.msra.mxu0 %v834
    %1820 = vmatprep.subr.bf16.mxu0 %v839
    %1821 = vmatpush1.bf16.msra.mxu0 %v838
    %1822 = vmatprep.subr.bf16.mxu0 %v843
    %1823 = vmatpush1.bf16.msra.mxu0 %v842
    %1824 = vmatprep.subr.bf16.mxu0 %v847
    %1825 = vmatpush1.bf16.msra.mxu0 %v846
    %1826 = vmatprep.mubr.bf16.mxu0 %v1791
    %1827 = vmatmul.mubr.bf16.gmra.mrb[0].mxu0 %v1790
    %v1828 = vpop.f32.mrb[0].mxu0
    %v1829 = vadd.f32 0.0, %v1828
    %v1830 = vpop.f32.mrb[0].mxu0
    %v1831 = vadd.f32 0.0, %v1830
    %v1832 = vpop.f32.mrb[0].mxu0
    %v1833 = vpop.f32.mrb[0].mxu0
    %1834 = vdwg.mxu0
    %1835 = vmatprep.subr.bf16.mxu0 %v851
    %1836 = vmatpush1.bf16.msra.mxu0 %v850
    %1837 = vmatprep.subr.bf16.mxu0 %v855
    %1838 = vmatpush1.bf16.msra.mxu0 %v854
    %1839 = vmatprep.subr.bf16.mxu0 %v859
    %1840 = vmatpush1.bf16.msra.mxu0 %v858
    %1841 = vmatprep.subr.bf16.mxu0 %v863
    %1842 = vmatpush1.bf16.msra.mxu0 %v862
    %1843 = vmatprep.subr.bf16.mxu0 %v867
    %1844 = vmatpush1.bf16.msra.mxu0 %v866
    %1845 = vmatprep.subr.bf16.mxu0 %v871
    %1846 = vmatpush1.bf16.msra.mxu0 %v870
    %1847 = vmatprep.subr.bf16.mxu0 %v875
    %1848 = vmatpush1.bf16.msra.mxu0 %v874
    %1849 = vmatprep.subr.bf16.mxu0 %v879
    %1850 = vmatpush1.bf16.msra.mxu0 %v878
    %1851 = vmatprep.subr.bf16.mxu0 %v883
    %1852 = vmatpush1.bf16.msra.mxu0 %v882
    %1853 = vmatprep.subr.bf16.mxu0 %v887
    %1854 = vmatpush1.bf16.msra.mxu0 %v886
    %1855 = vmatprep.subr.bf16.mxu0 %v891
    %1856 = vmatpush1.bf16.msra.mxu0 %v890
    %1857 = vmatprep.subr.bf16.mxu0 %v895
    %1858 = vmatpush1.bf16.msra.mxu0 %v894
    %1859 = vmatprep.subr.bf16.mxu0 %v899
    %1860 = vmatpush1.bf16.msra.mxu0 %v898
    %1861 = vmatprep.subr.bf16.mxu0 %v903
    %1862 = vmatpush1.bf16.msra.mxu0 %v902
    %1863 = vmatprep.subr.bf16.mxu0 %v907
    %1864 = vmatpush1.bf16.msra.mxu0 %v906
    %1865 = vmatprep.subr.bf16.mxu0 %v911
    %1866 = vmatpush1.bf16.msra.mxu0 %v910
    %1867 = vmatprep.mubr.bf16.mxu0 %v1793
    %1868 = vmatmul.mubr.bf16.gmra.mrb[0].mxu0 %v1792
    %v1869 = vpop.f32.mrb[0].mxu0
    %v1870 = vadd.f32 %v1829, %v1869
    %v1871 = vpop.f32.mrb[0].mxu0
    %v1872 = vadd.f32 %v1831, %v1871
    %v1873 = vpop.f32.mrb[0].mxu0
    %v1874 = vpop.f32.mrb[0].mxu0
    %1875 = vdwg.mxu0
    %1876 = vmatprep.subr.bf16.mxu0 %v789
    %1877 = vmatpush1.bf16.msra.mxu0 %v788
    %1878 = vmatprep.subr.bf16.mxu0 %v793
    %1879 = vmatpush1.bf16.msra.mxu0 %v792
    %1880 = vmatprep.subr.bf16.mxu0 %v797
    %1881 = vmatpush1.bf16.msra.mxu0 %v796
    %1882 = vmatprep.subr.bf16.mxu0 %v801
    %1883 = vmatpush1.bf16.msra.mxu0 %v800
    %1884 = vmatprep.subr.bf16.mxu0 %v805
    %1885 = vmatpush1.bf16.msra.mxu0 %v804
    %1886 = vmatprep.subr.bf16.mxu0 %v809
    %1887 = vmatpush1.bf16.msra.mxu0 %v808
    %1888 = vmatprep.subr.bf16.mxu0 %v813
    %1889 = vmatpush1.bf16.msra.mxu0 %v812
    %1890 = vmatprep.subr.bf16.mxu0 %v817
    %1891 = vmatpush1.bf16.msra.mxu0 %v816
    %1892 = vmatprep.subr.bf16.mxu0 %v821
    %1893 = vmatpush1.bf16.msra.mxu0 %v820
    %1894 = vmatprep.subr.bf16.mxu0 %v825
    %1895 = vmatpush1.bf16.msra.mxu0 %v824
    %1896 = vmatprep.subr.bf16.mxu0 %v829
    %1897 = vmatpush1.bf16.msra.mxu0 %v828
    %1898 = vmatprep.subr.bf16.mxu0 %v833
    %1899 = vmatpush1.bf16.msra.mxu0 %v832
    %1900 = vmatprep.subr.bf16.mxu0 %v837
    %1901 = vmatpush1.bf16.msra.mxu0 %v836
    %1902 = vmatprep.subr.bf16.mxu0 %v841
    %1903 = vmatpush1.bf16.msra.mxu0 %v840
    %1904 = vmatprep.subr.bf16.mxu0 %v845
    %1905 = vmatpush1.bf16.msra.mxu0 %v844
    %1906 = vmatprep.subr.bf16.mxu0 %v849
    %1907 = vmatpush1.bf16.msra.mxu0 %v848
    %1908 = vmatprep.mubr.bf16.mxu0 %v1791
    %1909 = vmatmul.mubr.bf16.gmra.mrb[0].mxu0 %v1790
    %v1910 = vpop.f32.mrb[0].mxu0
    %v1911 = vadd.f32 0.0, %v1910
    %v1912 = vpop.f32.mrb[0].mxu0
    %v1913 = vadd.f32 0.0, %v1912
    %v1914 = vpop.f32.mrb[0].mxu0
    %v1915 = vpop.f32.mrb[0].mxu0
    %1916 = vdwg.mxu0
    %1917 = vmatprep.subr.bf16.mxu0 %v853
    %1918 = vmatpush1.bf16.msra.mxu0 %v852
    %1919 = vmatprep.subr.bf16.mxu0 %v857
    %1920 = vmatpush1.bf16.msra.mxu0 %v856
    %1921 = vmatprep.subr.bf16.mxu0 %v861
    %1922 = vmatpush1.bf16.msra.mxu0 %v860
    %1923 = vmatprep.subr.bf16.mxu0 %v865
    %1924 = vmatpush1.bf16.msra.mxu0 %v864
    %1925 = vmatprep.subr.bf16.mxu0 %v869
    %1926 = vmatpush1.bf16.msra.mxu0 %v868
    %1927 = vmatprep.subr.bf16.mxu0 %v873
    %1928 = vmatpush1.bf16.msra.mxu0 %v872
    %1929 = vmatprep.subr.bf16.mxu0 %v877
    %1930 = vmatpush1.bf16.msra.mxu0 %v876
    %1931 = vmatprep.subr.bf16.mxu0 %v881
    %1932 = vmatpush1.bf16.msra.mxu0 %v880
    %1933 = vmatprep.subr.bf16.mxu0 %v885
    %1934 = vmatpush1.bf16.msra.mxu0 %v884
    %1935 = vmatprep.subr.bf16.mxu0 %v889
    %1936 = vmatpush1.bf16.msra.mxu0 %v888
    %1937 = vmatprep.subr.bf16.mxu0 %v893
    %1938 = vmatpush1.bf16.msra.mxu0 %v892
    %1939 = vmatprep.subr.bf16.mxu0 %v897
    %1940 = vmatpush1.bf16.msra.mxu0 %v896
    %1941 = vmatprep.subr.bf16.mxu0 %v901
    %1942 = vmatpush1.bf16.msra.mxu0 %v900
    %1943 = vmatprep.subr.bf16.mxu0 %v905
    %1944 = vmatpush1.bf16.msra.mxu0 %v904
    %1945 = vmatprep.subr.bf16.mxu0 %v909
    %1946 = vmatpush1.bf16.msra.mxu0 %v908
    %1947 = vmatprep.subr.bf16.mxu0 %v913
    %1948 = vmatpush1.bf16.msra.mxu0 %v912
    %1949 = vmatprep.mubr.bf16.mxu0 %v1793
    %1950 = vmatmul.mubr.bf16.gmra.mrb[0].mxu0 %v1792
    %v1951 = vpop.f32.mrb[0].mxu0
    %v1952 = vadd.f32 %v1911, %v1951
    %v1953 = vpop.f32.mrb[0].mxu0
    %v1954 = vadd.f32 %v1913, %v1953
    %v1955 = vpop.f32.mrb[0].mxu0
    %v1956 = vpop.f32.mrb[0].mxu0
    %1957 = vdwg.mxu0
    %v1958 = vadd.f32 %v693, %v1870
    %v1959 = vadd.f32 %v695, %v1872
    %v1960 = vadd.f32 %v766, %v1952
    %v1961 = vadd.f32 %v768, %v1954
    %v1962 = vtanh.pop %v1958
    %v1963 = vtanh.pop %v1959
    %v1964 = vtanh.pop %v1960
    %v1965 = vtanh.pop %v1961
    %v1966 = vpack.c.bf16 %v1962, %v1962
    %v1967 = vpack.c.bf16 %v1963, %v1963
    %v1968 = vpack.c.bf16 %v1964, %v1964
    %v1969 = vpack.c.bf16 %v1965, %v1965
    %1970 = vmatprep.subr.bf16.mxu0 %v787
    %1971 = vmatpush1.bf16.msra.mxu0 %v786
    %1972 = vmatprep.subr.bf16.mxu0 %v791
    %1973 = vmatpush1.bf16.msra.mxu0 %v790
    %1974 = vmatprep.subr.bf16.mxu0 %v795
    %1975 = vmatpush1.bf16.msra.mxu0 %v794
    %1976 = vmatprep.subr.bf16.mxu0 %v799
    %1977 = vmatpush1.bf16.msra.mxu0 %v798
    %1978 = vmatprep.subr.bf16.mxu0 %v803
    %1979 = vmatpush1.bf16.msra.mxu0 %v802
    %1980 = vmatprep.subr.bf16.mxu0 %v807
    %1981 = vmatpush1.bf16.msra.mxu0 %v806
    %1982 = vmatprep.subr.bf16.mxu0 %v811
    %1983 = vmatpush1.bf16.msra.mxu0 %v810
    %1984 = vmatprep.subr.bf16.mxu0 %v815
    %1985 = vmatpush1.bf16.msra.mxu0 %v814
    %1986 = vmatprep.subr.bf16.mxu0 %v819
    %1987 = vmatpush1.bf16.msra.mxu0 %v818
    %1988 = vmatprep.subr.bf16.mxu0 %v823
    %1989 = vmatpush1.bf16.msra.mxu0 %v822
    %1990 = vmatprep.subr.bf16.mxu0 %v827
    %1991 = vmatpush1.bf16.msra.mxu0 %v826
    %1992 = vmatprep.subr.bf16.mxu0 %v831
    %1993 = vmatpush1.bf16.msra.mxu0 %v830
    %1994 = vmatprep.subr.bf16.mxu0 %v835
    %1995 = vmatpush1.bf16.msra.mxu0 %v834
    %1996 = vmatprep.subr.bf16.mxu0 %v839
    %1997 = vmatpush1.bf16.msra.mxu0 %v838
    %1998 = vmatprep.subr.bf16.mxu0 %v843
    %1999 = vmatpush1.bf16.msra.mxu0 %v842
    %2000 = vmatprep.subr.bf16.mxu0 %v847
    %2001 = vmatpush1.bf16.msra.mxu0 %v846
    %2002 = vmatprep.mubr.bf16.mxu0 %v1967
    %2003 = vmatmul.mubr.bf16.gmra.mrb[0].mxu0 %v1966
    %v2004 = vpop.f32.mrb[0].mxu0
    %v2005 = vadd.f32 0.0, %v2004
    %v2006 = vpop.f32.mrb[0].mxu0
    %v2007 = vadd.f32 0.0, %v2006
    %v2008 = vpop.f32.mrb[0].mxu0
    %v2009 = vpop.f32.mrb[0].mxu0
    %2010 = vdwg.mxu0
    %2011 = vmatprep.subr.bf16.mxu0 %v851
    %2012 = vmatpush1.bf16.msra.mxu0 %v850
    %2013 = vmatprep.subr.bf16.mxu0 %v855
    %2014 = vmatpush1.bf16.msra.mxu0 %v854
    %2015 = vmatprep.subr.bf16.mxu0 %v859
    %2016 = vmatpush1.bf16.msra.mxu0 %v858
    %2017 = vmatprep.subr.bf16.mxu0 %v863
    %2018 = vmatpush1.bf16.msra.mxu0 %v862
    %2019 = vmatprep.subr.bf16.mxu0 %v867
    %2020 = vmatpush1.bf16.msra.mxu0 %v866
    %2021 = vmatprep.subr.bf16.mxu0 %v871
    %2022 = vmatpush1.bf16.msra.mxu0 %v870
    %2023 = vmatprep.subr.bf16.mxu0 %v875
    %2024 = vmatpush1.bf16.msra.mxu0 %v874
    %2025 = vmatprep.subr.bf16.mxu0 %v879
    %2026 = vmatpush1.bf16.msra.mxu0 %v878
    %2027 = vmatprep.subr.bf16.mxu0 %v883
    %2028 = vmatpush1.bf16.msra.mxu0 %v882
    %2029 = vmatprep.subr.bf16.mxu0 %v887
    %2030 = vmatpush1.bf16.msra.mxu0 %v886
    %2031 = vmatprep.subr.bf16.mxu0 %v891
    %2032 = vmatpush1.bf16.msra.mxu0 %v890
    %2033 = vmatprep.subr.bf16.mxu0 %v895
    %2034 = vmatpush1.bf16.msra.mxu0 %v894
    %2035 = vmatprep.subr.bf16.mxu0 %v899
    %2036 = vmatpush1.bf16.msra.mxu0 %v898
    %2037 = vmatprep.subr.bf16.mxu0 %v903
    %2038 = vmatpush1.bf16.msra.mxu0 %v902
    %2039 = vmatprep.subr.bf16.mxu0 %v907
    %2040 = vmatpush1.bf16.msra.mxu0 %v906
    %2041 = vmatprep.subr.bf16.mxu0 %v911
    %2042 = vmatpush1.bf16.msra.mxu0 %v910
    %2043 = vmatprep.mubr.bf16.mxu0 %v1969
    %2044 = vmatmul.mubr.bf16.gmra.mrb[0].mxu0 %v1968
    %v2045 = vpop.f32.mrb[0].mxu0
    %v2046 = vadd.f32 %v2005, %v2045
    %v2047 = vpop.f32.mrb[0].mxu0
    %v2048 = vadd.f32 %v2007, %v2047
    %v2049 = vpop.f32.mrb[0].mxu0
    %v2050 = vpop.f32.mrb[0].mxu0
    %2051 = vdwg.mxu0
    %2052 = vmatprep.subr.bf16.mxu0 %v789
    %2053 = vmatpush1.bf16.msra.mxu0 %v788
    %2054 = vmatprep.subr.bf16.mxu0 %v793
    %2055 = vmatpush1.bf16.msra.mxu0 %v792
    %2056 = vmatprep.subr.bf16.mxu0 %v797
    %2057 = vmatpush1.bf16.msra.mxu0 %v796
    %2058 = vmatprep.subr.bf16.mxu0 %v801
    %2059 = vmatpush1.bf16.msra.mxu0 %v800
    %2060 = vmatprep.subr.bf16.mxu0 %v805
    %2061 = vmatpush1.bf16.msra.mxu0 %v804
    %2062 = vmatprep.subr.bf16.mxu0 %v809
    %2063 = vmatpush1.bf16.msra.mxu0 %v808
    %2064 = vmatprep.subr.bf16.mxu0 %v813
    %2065 = vmatpush1.bf16.msra.mxu0 %v812
    %2066 = vmatprep.subr.bf16.mxu0 %v817
    %2067 = vmatpush1.bf16.msra.mxu0 %v816
    %2068 = vmatprep.subr.bf16.mxu0 %v821
    %2069 = vmatpush1.bf16.msra.mxu0 %v820
    %2070 = vmatprep.subr.bf16.mxu0 %v825
    %2071 = vmatpush1.bf16.msra.mxu0 %v824
    %2072 = vmatprep.subr.bf16.mxu0 %v829
    %2073 = vmatpush1.bf16.msra.mxu0 %v828
    %2074 = vmatprep.subr.bf16.mxu0 %v833
    %2075 = vmatpush1.bf16.msra.mxu0 %v832
    %2076 = vmatprep.subr.bf16.mxu0 %v837
    %2077 = vmatpush1.bf16.msra.mxu0 %v836
    %2078 = vmatprep.subr.bf16.mxu0 %v841
    %2079 = vmatpush1.bf16.msra.mxu0 %v840
    %2080 = vmatprep.subr.bf16.mxu0 %v845
    %2081 = vmatpush1.bf16.msra.mxu0 %v844
    %2082 = vmatprep.subr.bf16.mxu0 %v849
    %2083 = vmatpush1.bf16.msra.mxu0 %v848
    %2084 = vmatprep.mubr.bf16.mxu0 %v1967
    %2085 = vmatmul.mubr.bf16.gmra.mrb[0].mxu0 %v1966
    %v2086 = vpop.f32.mrb[0].mxu0
    %v2087 = vadd.f32 0.0, %v2086
    %v2088 = vpop.f32.mrb[0].mxu0
    %v2089 = vadd.f32 0.0, %v2088
    %v2090 = vpop.f32.mrb[0].mxu0
    %v2091 = vpop.f32.mrb[0].mxu0
    %2092 = vdwg.mxu0
    %2093 = vmatprep.subr.bf16.mxu0 %v853
    %2094 = vmatpush1.bf16.msra.mxu0 %v852
    %2095 = vmatprep.subr.bf16.mxu0 %v857
    %2096 = vmatpush1.bf16.msra.mxu0 %v856
    %2097 = vmatprep.subr.bf16.mxu0 %v861
    %2098 = vmatpush1.bf16.msra.mxu0 %v860
    %2099 = vmatprep.subr.bf16.mxu0 %v865
    %2100 = vmatpush1.bf16.msra.mxu0 %v864
    %2101 = vmatprep.subr.bf16.mxu0 %v869
    %2102 = vmatpush1.bf16.msra.mxu0 %v868
    %2103 = vmatprep.subr.bf16.mxu0 %v873
    %2104 = vmatpush1.bf16.msra.mxu0 %v872
    %2105 = vmatprep.subr.bf16.mxu0 %v877
    %2106 = vmatpush1.bf16.msra.mxu0 %v876
    %2107 = vmatprep.subr.bf16.mxu0 %v881
    %2108 = vmatpush1.bf16.msra.mxu0 %v880
    %2109 = vmatprep.subr.bf16.mxu0 %v885
    %2110 = vmatpush1.bf16.msra.mxu0 %v884
    %2111 = vmatprep.subr.bf16.mxu0 %v889
    %2112 = vmatpush1.bf16.msra.mxu0 %v888
    %2113 = vmatprep.subr.bf16.mxu0 %v893
    %2114 = vmatpush1.bf16.msra.mxu0 %v892
    %2115 = vmatprep.subr.bf16.mxu0 %v897
    %2116 = vmatpush1.bf16.msra.mxu0 %v896
    %2117 = vmatprep.subr.bf16.mxu0 %v901
    %2118 = vmatpush1.bf16.msra.mxu0 %v900
    %2119 = vmatprep.subr.bf16.mxu0 %v905
    %2120 = vmatpush1.bf16.msra.mxu0 %v904
    %2121 = vmatprep.subr.bf16.mxu0 %v909
    %2122 = vmatpush1.bf16.msra.mxu0 %v908
    %2123 = vmatprep.subr.bf16.mxu0 %v913
    %2124 = vmatpush1.bf16.msra.mxu0 %v912
    %2125 = vmatprep.mubr.bf16.mxu0 %v1969
    %2126 = vmatmul.mubr.bf16.gmra.mrb[0].mxu0 %v1968
    %v2127 = vpop.f32.mrb[0].mxu0
    %v2128 = vadd.f32 %v2087, %v2127
    %v2129 = vpop.f32.mrb[0].mxu0
    %v2130 = vadd.f32 %v2089, %v2129
    %v2131 = vpop.f32.mrb[0].mxu0
    %v2132 = vpop.f32.mrb[0].mxu0
    %2133 = vdwg.mxu0
    %v2134 = vadd.f32 %v697, %v2046
    %v2135 = vadd.f32 %v699, %v2048
    %v2136 = vadd.f32 %v770, %v2128
    %v2137 = vadd.f32 %v772, %v2130
    %v2138 = vtanh.pop %v2134
    %v2139 = vtanh.pop %v2135
    %v2140 = vtanh.pop %v2136
    %v2141 = vtanh.pop %v2137
    %s2142 = smul.u32 %s778, 1
    %s2143 = sshll.u32 %s2142, 4
    %2144 = dma.done %s69, %s2143
    %v2145 = vpack.c.bf16 %v2138, %v2138
    %v2146 = vpack.c.bf16 %v2139, %v2139
    %v2147 = vpack.c.bf16 %v2140, %v2140
    %v2148 = vpack.c.bf16 %v2141, %v2141
    %v2149 = vld [vmem:[#allocation3] sm:$0xff]
    %v2150 = vld [vmem:[#allocation3 + $0x8] sm:$0xff]
    %v2151 = vld [vmem:[#allocation3 + $0x10] sm:$0xff]
    %v2152 = vld [vmem:[#allocation3 + $0x18] sm:$0xff]
    %v2153 = vld [vmem:[#allocation3 + $0x20] sm:$0xff]
    %v2154 = vld [vmem:[#allocation3 + $0x28] sm:$0xff]
    %v2155 = vld [vmem:[#allocation3 + $0x30] sm:$0xff]
    %v2156 = vld [vmem:[#allocation3 + $0x38] sm:$0xff]
    %v2157 = vld [vmem:[#allocation3 + $0x40] sm:$0xff]
    %v2158 = vld [vmem:[#allocation3 + $0x48] sm:$0xff]
    %v2159 = vld [vmem:[#allocation3 + $0x50] sm:$0xff]
    %v2160 = vld [vmem:[#allocation3 + $0x58] sm:$0xff]
    %v2161 = vld [vmem:[#allocation3 + $0x60] sm:$0xff]
    %v2162 = vld [vmem:[#allocation3 + $0x68] sm:$0xff]
    %v2163 = vld [vmem:[#allocation3 + $0x70] sm:$0xff]
    %v2164 = vld [vmem:[#allocation3 + $0x78] sm:$0xff]
    %v2165 = vld [vmem:[#allocation3 + $0x80] sm:$0xff]
    %v2166 = vld [vmem:[#allocation3 + $0x88] sm:$0xff]
    %v2167 = vld [vmem:[#allocation3 + $0x90] sm:$0xff]
    %v2168 = vld [vmem:[#allocation3 + $0x98] sm:$0xff]
    %v2169 = vld [vmem:[#allocation3 + $0xa0] sm:$0xff]
    %v2170 = vld [vmem:[#allocation3 + $0xa8] sm:$0xff]
    %v2171 = vld [vmem:[#allocation3 + $0xb0] sm:$0xff]
    %v2172 = vld [vmem:[#allocation3 + $0xb8] sm:$0xff]
    %v2173 = vld [vmem:[#allocation3 + $0xc0] sm:$0xff]
    %v2174 = vld [vmem:[#allocation3 + $0xc8] sm:$0xff]
    %v2175 = vld [vmem:[#allocation3 + $0xd0] sm:$0xff]
    %v2176 = vld [vmem:[#allocation3 + $0xd8] sm:$0xff]
    %v2177 = vld [vmem:[#allocation3 + $0xe0] sm:$0xff]
    %v2178 = vld [vmem:[#allocation3 + $0xe8] sm:$0xff]
    %v2179 = vld [vmem:[#allocation3 + $0xf0] sm:$0xff]
    %v2180 = vld [vmem:[#allocation3 + $0xf8] sm:$0xff]
    %v2181 = vld [vmem:[%s5] sm:$0x1]
    %v2183 = vlaneseq
    %v2184 = vshrl.u32 %v2183, 7
    %v2185 = vsub.s32 0, %v2184
    %v2186 = vrot.slane %v2181, %v2185
    %2188 = vmatprep.subr.bf16.mxu0 0
    %2189 = vmatpush1.bf16.msra.mxu0 %v2149
    %2190 = vmatprep.subr.bf16.mxu0 0
    %2191 = vmatpush1.bf16.msra.mxu0 %v2150
    %2192 = vmatprep.subr.bf16.mxu0 0
    %2193 = vmatpush1.bf16.msra.mxu0 %v2151
    %2194 = vmatprep.subr.bf16.mxu0 0
    %2195 = vmatpush1.bf16.msra.mxu0 %v2152
    %2196 = vmatprep.subr.bf16.mxu0 0
    %2197 = vmatpush1.bf16.msra.mxu0 %v2153
    %2198 = vmatprep.subr.bf16.mxu0 0
    %2199 = vmatpush1.bf16.msra.mxu0 %v2154
    %2200 = vmatprep.subr.bf16.mxu0 0
    %2201 = vmatpush1.bf16.msra.mxu0 %v2155
    %2202 = vmatprep.subr.bf16.mxu0 0
    %2203 = vmatpush1.bf16.msra.mxu0 %v2156
    %2204 = vmatprep.subr.bf16.mxu0 0
    %2205 = vmatpush1.bf16.msra.mxu0 %v2157
    %2206 = vmatprep.subr.bf16.mxu0 0
    %2207 = vmatpush1.bf16.msra.mxu0 %v2158
    %2208 = vmatprep.subr.bf16.mxu0 0
    %2209 = vmatpush1.bf16.msra.mxu0 %v2159
    %2210 = vmatprep.subr.bf16.mxu0 0
    %2211 = vmatpush1.bf16.msra.mxu0 %v2160
    %2212 = vmatprep.subr.bf16.mxu0 0
    %2213 = vmatpush1.bf16.msra.mxu0 %v2161
    %2214 = vmatprep.subr.bf16.mxu0 0
    %2215 = vmatpush1.bf16.msra.mxu0 %v2162
    %2216 = vmatprep.subr.bf16.mxu0 0
    %2217 = vmatpush1.bf16.msra.mxu0 %v2163
    %2218 = vmatprep.subr.bf16.mxu0 0
    %2219 = vmatpush1.bf16.msra.mxu0 %v2164
    %2220 = vmatprep.mubr.bf16.mxu0 %v2146
    %2221 = vmatmul.mubr.bf16.gmra.mrb[0].mxu0 %v2145
    %v2222 = vpop.f32.mrb[0].mxu0
    %v2223 = vadd.f32 %v2186, %v2222
    %v2224 = vpop.f32.mrb[0].mxu0
    %v2225 = vpop.f32.mrb[0].mxu0
    %v2226 = vpop.f32.mrb[0].mxu0
    %2227 = vdwg.mxu0
    %2228 = vmatprep.subr.bf16.mxu0 0
    %2229 = vmatpush1.bf16.msra.mxu0 %v2165
    %2230 = vmatprep.subr.bf16.mxu0 0
    %2231 = vmatpush1.bf16.msra.mxu0 %v2166
    %2232 = vmatprep.subr.bf16.mxu0 0
    %2233 = vmatpush1.bf16.msra.mxu0 %v2167
    %2234 = vmatprep.subr.bf16.mxu0 0
    %2235 = vmatpush1.bf16.msra.mxu0 %v2168
    %2236 = vmatprep.subr.bf16.mxu0 0
    %2237 = vmatpush1.bf16.msra.mxu0 %v2169
    %2238 = vmatprep.subr.bf16.mxu0 0
    %2239 = vmatpush1.bf16.msra.mxu0 %v2170
    %2240 = vmatprep.subr.bf16.mxu0 0
    %2241 = vmatpush1.bf16.msra.mxu0 %v2171
    %2242 = vmatprep.subr.bf16.mxu0 0
    %2243 = vmatpush1.bf16.msra.mxu0 %v2172
    %2244 = vmatprep.subr.bf16.mxu0 0
    %2245 = vmatpush1.bf16.msra.mxu0 %v2173
    %2246 = vmatprep.subr.bf16.mxu0 0
    %2247 = vmatpush1.bf16.msra.mxu0 %v2174
    %2248 = vmatprep.subr.bf16.mxu0 0
    %2249 = vmatpush1.bf16.msra.mxu0 %v2175
    %2250 = vmatprep.subr.bf16.mxu0 0
    %2251 = vmatpush1.bf16.msra.mxu0 %v2176
    %2252 = vmatprep.subr.bf16.mxu0 0
    %2253 = vmatpush1.bf16.msra.mxu0 %v2177
    %2254 = vmatprep.subr.bf16.mxu0 0
    %2255 = vmatpush1.bf16.msra.mxu0 %v2178
    %2256 = vmatprep.subr.bf16.mxu0 0
    %2257 = vmatpush1.bf16.msra.mxu0 %v2179
    %2258 = vmatprep.subr.bf16.mxu0 0
    %2259 = vmatpush1.bf16.msra.mxu0 %v2180
    %2260 = vmatprep.mubr.bf16.mxu0 %v2148
    %2261 = vmatmul.mubr.bf16.gmra.mrb[0].mxu0 %v2147
    %v2262 = vpop.f32.mrb[0].mxu0
    %v2263 = vadd.f32 %v2223, %v2262
    %v2264 = vpop.f32.mrb[0].mxu0
    %v2265 = vpop.f32.mrb[0].mxu0
    %v2266 = vpop.f32.mrb[0].mxu0
    %2267 = vdwg.mxu0
    %2268 = vst [vmem:[%s6] sm:$0xff] %v2263
    // Predicated region
    $region56: #{liquid_nn_forward.1} parent=1 // pred_check
      _
    $region57: #{liquid_nn_forward.1} parent=1 // pred_check_branch
      %2270 = sbr.rel (0) target = $region59
    $region58: #{liquid_nn_forward.1} parent=1 // pred_region
      _
    $region59: #{liquid_nn_forward.1} parent=1 // pred_fallthru
      _
    // Predicated region
    $region60: #{liquid_nn_forward.1} parent=1 // pred_check
      _
    $region61: #{liquid_nn_forward.1} parent=1 // pred_check_branch
      %2272 = sbr.rel (0) target = $region63
    $region62: #{liquid_nn_forward.1} parent=1 // pred_region
      _
    $region63: #{liquid_nn_forward.1} parent=1 // pred_fallthru
      _
    %2273 = vsyncpa [#allocation6], 1
  %2274 = vsyncmov [#allocation4]
  %s2275 = vpop.sfrf %2274
  %p2276 = scmp.eq.s32.totalorder %s2275, 0
  %p2277 = pneg %p2276
  %2279 = shalt.err (%p2277)
  %s2280 = scalar_lea.sflag [#allocation4], 1
  %2281 = vsyncmov %s2280
  %s2282 = vpop.sfrf %2281
  %p2283 = scmp.eq.s32.totalorder %s2282, 0
  %p2284 = pneg %p2283
  %2286 = shalt.err (%p2284)

</llo_original>
